<compile_context>
chip_gen: v5e
topology: v5e:2x2
jax: 0.10.0
libtpu: 0.0.40
codegen_flags: <defaults>
</compile_context>

<pallas_src>
import math

import jax
import jax.numpy as jnp
from jax import lax
from jax.experimental import pallas as pl
from jax.experimental.pallas import tpu as pltpu


def _pick_tile(s, target=256):
    """Largest tile <= target that divides s (prefer multiples of 8)."""
    if s <= target:
        return s
    t = target
    while t >= 8:
        if s % t == 0:
            return t
        t -= 8
    t = target
    while t >= 1:
        if s % t == 0:
            return t
        t -= 1
    return s


def _is_pre_v6():
    """True on v5-class or older chips (no bf16 VPU/EUP fast path)."""
    try:
        kind = jax.devices()[0].device_kind.lower()
    except Exception:
        return True
    return any(k in kind for k in ("v2", "v3", "v4", "v5"))


def _make_kernel(H, D, T, softmax_scale, out_dtype, exp_dtype, mm_dtype,
                 approx_recip):
    def kernel(qi_ref, ki_ref, q_ref, k_ref, v_ref, o_ref,
               qs_sc, m_sc, l_sc, acc_sc):
        # q_ref/k_ref/v_ref: (T, H, D)   o_ref: (T, H*D)
        step = pl.program_id(1)
        qi = qi_ref[step]
        ki = ki_ref[step]

        # ki == 0 is always the first pair of each q block in the causal
        # schedule -> init (and q pre-scale) fires exactly once per (b, qi).
        @pl.when(ki == 0)
        def _init():
            qs_sc[...] = (q_ref[...] * softmax_scale).astype(qs_sc.dtype)
            m_sc[...] = jnp.full(m_sc.shape, -jnp.inf, m_sc.dtype)
            l_sc[...] = jnp.zeros(l_sc.shape, l_sc.dtype)
            acc_sc[...] = jnp.zeros(acc_sc.shape, acc_sc.dtype)

        # Additive causal bias (matches torch: scores + triu(full(-10000), 1)).
        # Identically zero for blocks strictly below the diagonal; computed
        # once per grid step and shared by all heads.
        row = lax.broadcasted_iota(jnp.int32, (T, T), 0) + qi * T
        col = lax.broadcasted_iota(jnp.int32, (T, T), 1) + ki * T
        bias = jnp.where(col > row, jnp.float32(-10000.0), jnp.float32(0.0))

        for h in range(H):
            q_h = qs_sc[:, h, :]                       # (T, D), pre-scaled
            k_h = k_ref[:, h, :]                       # (T, D)
            # QK^T: contract D on both operands (no explicit K transpose).
            s = lax.dot_general(q_h, k_h, (((1,), (1,)), ((), ())),
                                preferred_element_type=jnp.float32)
            s = s + bias
            m_prev = m_sc[h]                           # (T, 1)
            m_new = jnp.maximum(m_prev, jnp.max(s, axis=-1, keepdims=True))
            alpha = jnp.exp(m_prev - m_new)
            p = jnp.exp((s - m_new).astype(exp_dtype))
            l_sc[h] = alpha * l_sc[h] + jnp.sum(
                p.astype(jnp.float32), axis=-1, keepdims=True)
            acc_sc[h] = alpha * acc_sc[h] + jnp.dot(
                p.astype(mm_dtype), v_ref[:, h, :],
                preferred_element_type=jnp.float32)
            m_sc[h] = m_new

        # ki == qi is the last causal KV block of this q block (T == TKV).
        @pl.when(ki == qi)
        def _finalize():
            for h in range(H):
                inv = pl.reciprocal(l_sc[h], approx=approx_recip)   # (T, 1)
                o_ref[:, pl.ds(h * D, D)] = (acc_sc[h] * inv).astype(out_dtype)

    return kernel


def self_attention(qkv):
    """Causal multi-head self attention on packed qkv.

    Args:
      qkv: (B, S, 3, H, D) array.
    Returns:
      (B, S, H, D) array, same dtype as qkv (eval mode, dropout_p = 0).
    """
    B, S, three, H, D = qkv.shape
    assert three == 3
    softmax_scale = 1.0 / math.sqrt(D)
    out_dtype = qkv.dtype
    is_16bit = jnp.dtype(qkv.dtype).itemsize <= 2

    T = _pick_tile(S, 256)          # 256-wide tiles fill the v6e/v7x MXU
    nq = S // T

    # Flattened lower-triangular (qi, ki) schedule, scalar-prefetched to SMEM.
    qi_list, ki_list = [], []
    for q_blk in range(nq):
        for k_blk in range(q_blk + 1):
            qi_list.append(q_blk)
            ki_list.append(k_blk)
    qi_ids = jnp.asarray(qi_list, dtype=jnp.int32)
    ki_ids = jnp.asarray(ki_list, dtype=jnp.int32)
    n_pairs = len(qi_list)

    # exp in bf16 only on v6e/v7x-class chips and only for 16-bit inputs
    # (keeps f32 numerics identical to the reference; v5e has no bf16 EUP).
    use_bf16_exp = is_16bit and not _is_pre_v6()
    exp_dtype = jnp.bfloat16 if use_bf16_exp else jnp.float32
    mm_dtype = qkv.dtype if is_16bit else jnp.float32
    approx_recip = is_16bit

    kernel = _make_kernel(H, D, T, softmax_scale, out_dtype, exp_dtype,
                          mm_dtype, approx_recip)

    grid_spec = pltpu.PrefetchScalarGridSpec(
        num_scalar_prefetch=2,
        grid=(B, n_pairs),
        in_specs=[
            # q / k / v planes sliced straight out of the packed tensor
            # (same array passed three times, one BlockSpec per plane);
            # K/V rows follow the prefetched causal schedule, so no
            # above-diagonal tile is ever DMA'd.
            pl.BlockSpec((None, T, None, H, D),
                         lambda b, p, qi_r, ki_r: (b, qi_r[p], 0, 0, 0)),
            pl.BlockSpec((None, T, None, H, D),
                         lambda b, p, qi_r, ki_r: (b, ki_r[p], 1, 0, 0)),
            pl.BlockSpec((None, T, None, H, D),
                         lambda b, p, qi_r, ki_r: (b, ki_r[p], 2, 0, 0)),
        ],
        # Lane-dense output block: last block dim == full (H*D) array dim,
        # resident across the KV steps of each q block (accumulator pattern).
        out_specs=pl.BlockSpec((None, T, H * D),
                               lambda b, p, qi_r, ki_r: (b, qi_r[p], 0)),
        scratch_shapes=[
            pltpu.VMEM((T, H, D), qkv.dtype),      # pre-scaled q block
            pltpu.VMEM((H, T, 1), jnp.float32),    # running max
            pltpu.VMEM((H, T, 1), jnp.float32),    # running denominator
            pltpu.VMEM((H, T, D), jnp.float32),    # output accumulator
        ],
    )

    # Explicit VMEM budget with headroom (v7x has only 64 MiB physical VMEM);
    # clamped to the 32 MiB default scope so it is safe on every generation.
    itemsize = jnp.dtype(qkv.dtype).itemsize
    blk = T * H * D
    est = (2 * 3 * blk * itemsize       # q, k, v blocks (double-buffered)
           + 2 * blk * itemsize         # output block (double-buffered)
           + blk * itemsize             # pre-scaled q scratch
           + H * T * D * 4              # f32 accumulator
           + 2 * H * T * 128 * 4)       # m / l scratch (lane-padded)
    vmem_limit = int(min(max(2 * est, 16 * 2 ** 20), 32 * 2 ** 20))

    out = pl.pallas_call(
        kernel,
        out_shape=jax.ShapeDtypeStruct((B, S, H * D), out_dtype),
        grid_spec=grid_spec,
        compiler_params=pltpu.CompilerParams(
            dimension_semantics=("parallel", "arbitrary"),
            vmem_limit_bytes=vmem_limit),
    )(qi_ids, ki_ids, qkv, qkv, qkv)

    return out.reshape(B, S, H, D)


def _reference(qkv):
    """Pure-JAX f32 reference mirroring the PyTorch non-flash path."""
    B, S, _, H, D = qkv.shape
    scale = 1.0 / math.sqrt(D)
    q = qkv[:, :, 0].astype(jnp.float32)
    k = qkv[:, :, 1].astype(jnp.float32)
    v = qkv[:, :, 2].astype(jnp.float32)
    scores = jnp.einsum('bthd,bshd->bhts', q, k * scale)
    causal = jnp.triu(jnp.full((S, S), -10000.0, dtype=scores.dtype), 1)
    scores = scores + causal
    attn = jax.nn.softmax(scores, axis=-1)
    return jnp.einsum('bhts,bshd->bthd', attn, v)


if __name__ == "__main__":
    # Small deterministic case (module default: eval mode, dropout_p = 0.0).
    B, S, H, D = 2, 8, 4, 32
    qkv = jax.random.normal(jax.random.PRNGKey(0), (B, S, 3, H, D),
                            dtype=jnp.float32)
    out = jax.block_until_ready(self_attention(qkv))
    ref = _reference(qkv)
    assert out.shape == (B, S, H, D)
    assert jnp.allclose(out, ref, atol=1e-4, rtol=1e-4), "mismatch vs reference"

    # Longer sequence: multiple q/kv blocks -> exercises the flattened causal
    # grid, K/V DMA reuse, online-softmax rescaling and lane-dense stores.
    qkv2 = jax.random.normal(jax.random.PRNGKey(1), (1, 512, 3, 2, 64),
                             dtype=jnp.float32)
    out2 = jax.block_until_ready(self_attention(qkv2))
    ref2 = _reference(qkv2)
    assert jnp.allclose(out2, ref2, atol=2e-4, rtol=2e-4), "mismatch (tiled f32)"

    # bf16 path (flash-attn branch of the torch module): bf16 MXU operands and,
    # on v6e/v7x, the bf16 exp fast path.
    qkv3 = jax.random.normal(jax.random.PRNGKey(2), (1, 512, 3, 4, 64),
                             dtype=jnp.bfloat16)
    out3 = jax.block_until_ready(self_attention(qkv3))
    ref3 = _reference(qkv3)
    assert out3.dtype == jnp.bfloat16
    assert jnp.allclose(out3.astype(jnp.float32), ref3,
                        atol=5e-2, rtol=5e-2), "mismatch (bf16)"

    print("KERNEL_OK")
</pallas_src>

<mosaic_0001>
module attributes {stable_mosaic.version = 11 : i64} {
  func.func @kernel(%arg0: i32, %arg1: i32, %arg2: memref<1xi32, #tpu.memory_space<smem>>, %arg3: memref<1xi32, #tpu.memory_space<smem>>, %arg4: memref<1x8x1x4x32xf32, #tpu.memory_space<vmem>>, %arg5: memref<1x8x1x4x32xf32, #tpu.memory_space<vmem>>, %arg6: memref<1x8x1x4x32xf32, #tpu.memory_space<vmem>>, %arg7: memref<1x8x128xf32, #tpu.memory_space<vmem>>, %arg8: memref<8x4x32xf32, #tpu.memory_space<vmem>>, %arg9: memref<4x8x1xf32, #tpu.memory_space<vmem>>, %arg10: memref<4x8x1xf32, #tpu.memory_space<vmem>>, %arg11: memref<4x8x32xf32, #tpu.memory_space<vmem>>) attributes {dimension_semantics = [#tpu.dimension_semantics<parallel>, #tpu.dimension_semantics<arbitrary>], iteration_bounds = array<i64: 2, 1>, scalar_prefetch = 2 : i64, scratch_operands = 4 : i64, tpu.core_type = #tpu.core_type<tc>, window_params = [{transform_indices = @transform_0, window_bounds = array<i64: 1, 8, 1, 4, 32>}, {transform_indices = @transform_1, window_bounds = array<i64: 1, 8, 1, 4, 32>}, {transform_indices = @transform_2, window_bounds = array<i64: 1, 8, 1, 4, 32>}, {transform_indices = @transform_3, window_bounds = array<i64: 1, 8, 128>}]} {
    %0 = arith.index_cast %arg1 : i32 to index
    %1 = memref.load %arg2[%0] : memref<1xi32, #tpu.memory_space<smem>>
    %2 = arith.index_cast %arg1 : i32 to index
    %3 = memref.load %arg3[%2] : memref<1xi32, #tpu.memory_space<smem>>
    %c0_i32 = arith.constant 0 : i32
    %4 = arith.cmpi eq, %3, %c0_i32 : i32
    %5 = arith.extui %4 : i1 to i32
    %c0_i32_0 = arith.constant 0 : i32
    %6 = arith.cmpi ne, %5, %c0_i32_0 : i32
    scf.if %6 {
      %c0_140 = arith.constant 0 : index
      %c0_141 = arith.constant 0 : index
      %c0_142 = arith.constant 0 : index
      %c0_143 = arith.constant 0 : index
      %c0_144 = arith.constant 0 : index
      %178 = vector.load %arg4[%c0_140, %c0_141, %c0_142, %c0_143, %c0_144] : memref<1x8x1x4x32xf32, #tpu.memory_space<vmem>>, vector<1x8x1x4x32xf32>
      %179 = vector.shape_cast %178 : vector<1x8x1x4x32xf32> to vector<8x4x32xf32>
      %cst_145 = arith.constant 0.176776692 : f32
      %180 = vector.broadcast %cst_145 : f32 to vector<8x4x32xf32>
      %181 = arith.mulf %179, %180 : vector<8x4x32xf32>
      %c0_146 = arith.constant 0 : index
      %c0_147 = arith.constant 0 : index
      %c0_148 = arith.constant 0 : index
      %182 = vector.load %arg8[%c0_146, %c0_147, %c0_148] : memref<8x4x32xf32, #tpu.memory_space<vmem>>, vector<8x4x32xf32>
      tpu.vector_store %arg8[%c0_146, %c0_147, %c0_148], %181 {strides = array<i32>} : memref<8x4x32xf32, #tpu.memory_space<vmem>>, vector<8x4x32xf32>,
      %cst_149 = arith.constant 0xFF800000 : f32
      %183 = vector.broadcast %cst_149 : f32 to vector<4x8x1xf32>
      %c0_150 = arith.constant 0 : index
      %c0_151 = arith.constant 0 : index
      %c0_152 = arith.constant 0 : index
      %184 = vector.load %arg9[%c0_150, %c0_151, %c0_152] : memref<4x8x1xf32, #tpu.memory_space<vmem>>, vector<4x8x1xf32>
      tpu.vector_store %arg9[%c0_150, %c0_151, %c0_152], %183 {strides = array<i32>} : memref<4x8x1xf32, #tpu.memory_space<vmem>>, vector<4x8x1xf32>,
      %cst_153 = arith.constant 0.000000e+00 : f32
      %185 = vector.broadcast %cst_153 : f32 to vector<4x8x1xf32>
      %c0_154 = arith.constant 0 : index
      %c0_155 = arith.constant 0 : index
      %c0_156 = arith.constant 0 : index
      %186 = vector.load %arg10[%c0_154, %c0_155, %c0_156] : memref<4x8x1xf32, #tpu.memory_space<vmem>>, vector<4x8x1xf32>
      tpu.vector_store %arg10[%c0_154, %c0_155, %c0_156], %185 {strides = array<i32>} : memref<4x8x1xf32, #tpu.memory_space<vmem>>, vector<4x8x1xf32>,
      %cst_157 = arith.constant 0.000000e+00 : f32
      %187 = vector.broadcast %cst_157 : f32 to vector<4x8x32xf32>
      %c0_158 = arith.constant 0 : index
      %c0_159 = arith.constant 0 : index
      %c0_160 = arith.constant 0 : index
      %188 = vector.load %arg11[%c0_158, %c0_159, %c0_160] : memref<4x8x32xf32, #tpu.memory_space<vmem>>, vector<4x8x32xf32>
      tpu.vector_store %arg11[%c0_158, %c0_159, %c0_160], %187 {strides = array<i32>} : memref<4x8x32xf32, #tpu.memory_space<vmem>>, vector<4x8x32xf32>,
    } else {
    }
    %7 = tpu.iota {dimensions = array<i32: 0>} : vector<8x8xi32>
    %c8_i32 = arith.constant 8 : i32
    %8 = arith.muli %1, %c8_i32 : i32
    %9 = vector.broadcast %8 : i32 to vector<8x8xi32>
    %10 = arith.addi %7, %9 : vector<8x8xi32>
    %11 = tpu.iota {dimensions = array<i32: 1>} : vector<8x8xi32>
    %c8_i32_1 = arith.constant 8 : i32
    %12 = arith.muli %3, %c8_i32_1 : i32
    %13 = vector.broadcast %12 : i32 to vector<8x8xi32>
    %14 = arith.addi %11, %13 : vector<8x8xi32>
    %15 = arith.cmpi sgt, %14, %10 : vector<8x8xi32>
    %cst = arith.constant -1.000000e+04 : f32
    %cst_2 = arith.constant 0.000000e+00 : f32
    %16 = vector.broadcast %cst : f32 to vector<8x8xf32>
    %17 = vector.broadcast %cst_2 : f32 to vector<8x8xf32>
    %18 = arith.select %15, %16, %17 : vector<8x8xi1>, vector<8x8xf32>
    %c0 = arith.constant 0 : index
    %c0_3 = arith.constant 0 : index
    %c0_4 = arith.constant 0 : index
    %19 = vector.load %arg8[%c0, %c0_3, %c0_4] : memref<8x4x32xf32, #tpu.memory_space<vmem>>, vector<8x1x32xf32>
    %20 = vector.shape_cast %19 : vector<8x1x32xf32> to vector<8x32xf32>
    %c0_5 = arith.constant 0 : index
    %c0_6 = arith.constant 0 : index
    %c0_7 = arith.constant 0 : index
    %c0_8 = arith.constant 0 : index
    %c0_9 = arith.constant 0 : index
    %21 = vector.load %arg5[%c0_5, %c0_6, %c0_7, %c0_8, %c0_9] : memref<1x8x1x4x32xf32, #tpu.memory_space<vmem>>, vector<1x8x1x1x32xf32>
    %22 = vector.shape_cast %21 : vector<1x8x1x1x32xf32> to vector<8x32xf32>
    %cst_10 = arith.constant dense<0.000000e+00> : vector<8x8xf32>
    %23 = tpu.matmul %20, %22, %cst_10 {dimension_numbers = #tpu.dot_dimension_numbers<[1], [1], [0], [0], [0, 0, 1, 0], [], []>} : vector<8x32xf32>, vector<8x32xf32>, vector<8x8xf32> -> vector<8x8xf32>
    %24 = arith.addf %23, %18 : vector<8x8xf32>
    %c0_11 = arith.constant 0 : index
    %c0_12 = arith.constant 0 : index
    %c0_13 = arith.constant 0 : index
    %25 = vector.load %arg9[%c0_11, %c0_12, %c0_13] : memref<4x8x1xf32, #tpu.memory_space<vmem>>, vector<1x8x1xf32>
    %26 = vector.shape_cast %25 : vector<1x8x1xf32> to vector<8x1xf32>
    %cst_14 = arith.constant dense<0xFF800000> : vector<8xf32>
    %27 = vector.multi_reduction <maximumf>, %24, %cst_14 [1] : vector<8x8xf32> to vector<8xf32>
    %28 = vector.shape_cast %27 : vector<8xf32> to vector<8x1xf32>
    %29 = arith.maximumf %26, %28 : vector<8x1xf32>
    %30 = arith.subf %26, %29 : vector<8x1xf32>
    %31 = math.exp %30 : vector<8x1xf32>
    %32 = vector.broadcast %29 : vector<8x1xf32> to vector<8x8xf32>
    %33 = arith.subf %24, %32 : vector<8x8xf32>
    %34 = math.exp %33 : vector<8x8xf32>
    %c0_15 = arith.constant 0 : index
    %c0_16 = arith.constant 0 : index
    %c0_17 = arith.constant 0 : index
    %35 = vector.load %arg10[%c0_15, %c0_16, %c0_17] : memref<4x8x1xf32, #tpu.memory_space<vmem>>, vector<1x8x1xf32>
    %36 = vector.shape_cast %35 : vector<1x8x1xf32> to vector<8x1xf32>
    %37 = arith.mulf %31, %36 : vector<8x1xf32>
    %cst_18 = arith.constant dense<0.000000e+00> : vector<8xf32>
    %38 = vector.multi_reduction <add>, %34, %cst_18 [1] : vector<8x8xf32> to vector<8xf32>
    %39 = vector.shape_cast %38 : vector<8xf32> to vector<8x1xf32>
    %40 = arith.addf %37, %39 : vector<8x1xf32>
    %c0_19 = arith.constant 0 : index
    %c0_20 = arith.constant 0 : index
    %c0_21 = arith.constant 0 : index
    %41 = vector.load %arg10[%c0_19, %c0_20, %c0_21] : memref<4x8x1xf32, #tpu.memory_space<vmem>>, vector<1x8x1xf32>
    %42 = vector.shape_cast %41 : vector<1x8x1xf32> to vector<8x1xf32>
    %43 = vector.shape_cast %40 : vector<8x1xf32> to vector<1x8x1xf32>
    tpu.vector_store %arg10[%c0_19, %c0_20, %c0_21], %43 {strides = array<i32>} : memref<4x8x1xf32, #tpu.memory_space<vmem>>, vector<1x8x1xf32>,
    %c0_22 = arith.constant 0 : index
    %c0_23 = arith.constant 0 : index
    %c0_24 = arith.constant 0 : index
    %44 = vector.load %arg11[%c0_22, %c0_23, %c0_24] : memref<4x8x32xf32, #tpu.memory_space<vmem>>, vector<1x8x32xf32>
    %45 = vector.shape_cast %44 : vector<1x8x32xf32> to vector<8x32xf32>
    %46 = vector.broadcast %31 : vector<8x1xf32> to vector<8x32xf32>
    %47 = arith.mulf %46, %45 : vector<8x32xf32>
    %c0_25 = arith.constant 0 : index
    %c0_26 = arith.constant 0 : index
    %c0_27 = arith.constant 0 : index
    %c0_28 = arith.constant 0 : index
    %c0_29 = arith.constant 0 : index
    %48 = vector.load %arg6[%c0_25, %c0_26, %c0_27, %c0_28, %c0_29] : memref<1x8x1x4x32xf32, #tpu.memory_space<vmem>>, vector<1x8x1x1x32xf32>
    %49 = vector.shape_cast %48 : vector<1x8x1x1x32xf32> to vector<8x32xf32>
    %cst_30 = arith.constant dense<0.000000e+00> : vector<8x32xf32>
    %50 = tpu.matmul %34, %49, %cst_30 {dimension_numbers = #tpu.dot_dimension_numbers<[1], [0], [0], [1], [0, 0, 1, 1], [], []>} : vector<8x8xf32>, vector<8x32xf32>, vector<8x32xf32> -> vector<8x32xf32>
    %51 = arith.addf %47, %50 : vector<8x32xf32>
    %c0_31 = arith.constant 0 : index
    %c0_32 = arith.constant 0 : index
    %c0_33 = arith.constant 0 : index
    %52 = vector.load %arg11[%c0_31, %c0_32, %c0_33] : memref<4x8x32xf32, #tpu.memory_space<vmem>>, vector<1x8x32xf32>
    %53 = vector.shape_cast %52 : vector<1x8x32xf32> to vector<8x32xf32>
    %54 = vector.shape_cast %51 : vector<8x32xf32> to vector<1x8x32xf32>
    tpu.vector_store %arg11[%c0_31, %c0_32, %c0_33], %54 {strides = array<i32>} : memref<4x8x32xf32, #tpu.memory_space<vmem>>, vector<1x8x32xf32>,
    %c0_34 = arith.constant 0 : index
    %c0_35 = arith.constant 0 : index
    %c0_36 = arith.constant 0 : index
    %55 = vector.load %arg9[%c0_34, %c0_35, %c0_36] : memref<4x8x1xf32, #tpu.memory_space<vmem>>, vector<1x8x1xf32>
    %56 = vector.shape_cast %55 : vector<1x8x1xf32> to vector<8x1xf32>
    %57 = vector.shape_cast %29 : vector<8x1xf32> to vector<1x8x1xf32>
    tpu.vector_store %arg9[%c0_34, %c0_35, %c0_36], %57 {strides = array<i32>} : memref<4x8x1xf32, #tpu.memory_space<vmem>>, vector<1x8x1xf32>,
    %c0_37 = arith.constant 0 : index
    %c1 = arith.constant 1 : index
    %c0_38 = arith.constant 0 : index
    %58 = vector.load %arg8[%c0_37, %c1, %c0_38] : memref<8x4x32xf32, #tpu.memory_space<vmem>>, vector<8x1x32xf32>
    %59 = vector.shape_cast %58 : vector<8x1x32xf32> to vector<8x32xf32>
    %c0_39 = arith.constant 0 : index
    %c0_40 = arith.constant 0 : index
    %c0_41 = arith.constant 0 : index
    %c1_42 = arith.constant 1 : index
    %c0_43 = arith.constant 0 : index
    %60 = vector.load %arg5[%c0_39, %c0_40, %c0_41, %c1_42, %c0_43] : memref<1x8x1x4x32xf32, #tpu.memory_space<vmem>>, vector<1x8x1x1x32xf32>
    %61 = vector.shape_cast %60 : vector<1x8x1x1x32xf32> to vector<8x32xf32>
    %cst_44 = arith.constant dense<0.000000e+00> : vector<8x8xf32>
    %62 = tpu.matmul %59, %61, %cst_44 {dimension_numbers = #tpu.dot_dimension_numbers<[1], [1], [0], [0], [0, 0, 1, 0], [], []>} : vector<8x32xf32>, vector<8x32xf32>, vector<8x8xf32> -> vector<8x8xf32>
    %63 = arith.addf %62, %18 : vector<8x8xf32>
    %c1_45 = arith.constant 1 : index
    %c0_46 = arith.constant 0 : index
    %c0_47 = arith.constant 0 : index
    %64 = vector.load %arg9[%c1_45, %c0_46, %c0_47] : memref<4x8x1xf32, #tpu.memory_space<vmem>>, vector<1x8x1xf32>
    %65 = vector.shape_cast %64 : vector<1x8x1xf32> to vector<8x1xf32>
    %cst_48 = arith.constant dense<0xFF800000> : vector<8xf32>
    %66 = vector.multi_reduction <maximumf>, %63, %cst_48 [1] : vector<8x8xf32> to vector<8xf32>
    %67 = vector.shape_cast %66 : vector<8xf32> to vector<8x1xf32>
    %68 = arith.maximumf %65, %67 : vector<8x1xf32>
    %69 = arith.subf %65, %68 : vector<8x1xf32>
    %70 = math.exp %69 : vector<8x1xf32>
    %71 = vector.broadcast %68 : vector<8x1xf32> to vector<8x8xf32>
    %72 = arith.subf %63, %71 : vector<8x8xf32>
    %73 = math.exp %72 : vector<8x8xf32>
    %c1_49 = arith.constant 1 : index
    %c0_50 = arith.constant 0 : index
    %c0_51 = arith.constant 0 : index
    %74 = vector.load %arg10[%c1_49, %c0_50, %c0_51] : memref<4x8x1xf32, #tpu.memory_space<vmem>>, vector<1x8x1xf32>
    %75 = vector.shape_cast %74 : vector<1x8x1xf32> to vector<8x1xf32>
    %76 = arith.mulf %70, %75 : vector<8x1xf32>
    %cst_52 = arith.constant dense<0.000000e+00> : vector<8xf32>
    %77 = vector.multi_reduction <add>, %73, %cst_52 [1] : vector<8x8xf32> to vector<8xf32>
    %78 = vector.shape_cast %77 : vector<8xf32> to vector<8x1xf32>
    %79 = arith.addf %76, %78 : vector<8x1xf32>
    %c1_53 = arith.constant 1 : index
    %c0_54 = arith.constant 0 : index
    %c0_55 = arith.constant 0 : index
    %80 = vector.load %arg10[%c1_53, %c0_54, %c0_55] : memref<4x8x1xf32, #tpu.memory_space<vmem>>, vector<1x8x1xf32>
    %81 = vector.shape_cast %80 : vector<1x8x1xf32> to vector<8x1xf32>
    %82 = vector.shape_cast %79 : vector<8x1xf32> to vector<1x8x1xf32>
    tpu.vector_store %arg10[%c1_53, %c0_54, %c0_55], %82 {strides = array<i32>} : memref<4x8x1xf32, #tpu.memory_space<vmem>>, vector<1x8x1xf32>,
    %c1_56 = arith.constant 1 : index
    %c0_57 = arith.constant 0 : index
    %c0_58 = arith.constant 0 : index
    %83 = vector.load %arg11[%c1_56, %c0_57, %c0_58] : memref<4x8x32xf32, #tpu.memory_space<vmem>>, vector<1x8x32xf32>
    %84 = vector.shape_cast %83 : vector<1x8x32xf32> to vector<8x32xf32>
    %85 = vector.broadcast %70 : vector<8x1xf32> to vector<8x32xf32>
    %86 = arith.mulf %85, %84 : vector<8x32xf32>
    %c0_59 = arith.constant 0 : index
    %c0_60 = arith.constant 0 : index
    %c0_61 = arith.constant 0 : index
    %c1_62 = arith.constant 1 : index
    %c0_63 = arith.constant 0 : index
    %87 = vector.load %arg6[%c0_59, %c0_60, %c0_61, %c1_62, %c0_63] : memref<1x8x1x4x32xf32, #tpu.memory_space<vmem>>, vector<1x8x1x1x32xf32>
    %88 = vector.shape_cast %87 : vector<1x8x1x1x32xf32> to vector<8x32xf32>
    %cst_64 = arith.constant dense<0.000000e+00> : vector<8x32xf32>
    %89 = tpu.matmul %73, %88, %cst_64 {dimension_numbers = #tpu.dot_dimension_numbers<[1], [0], [0], [1], [0, 0, 1, 1], [], []>} : vector<8x8xf32>, vector<8x32xf32>, vector<8x32xf32> -> vector<8x32xf32>
    %90 = arith.addf %86, %89 : vector<8x32xf32>
    %c1_65 = arith.constant 1 : index
    %c0_66 = arith.constant 0 : index
    %c0_67 = arith.constant 0 : index
    %91 = vector.load %arg11[%c1_65, %c0_66, %c0_67] : memref<4x8x32xf32, #tpu.memory_space<vmem>>, vector<1x8x32xf32>
    %92 = vector.shape_cast %91 : vector<1x8x32xf32> to vector<8x32xf32>
    %93 = vector.shape_cast %90 : vector<8x32xf32> to vector<1x8x32xf32>
    tpu.vector_store %arg11[%c1_65, %c0_66, %c0_67], %93 {strides = array<i32>} : memref<4x8x32xf32, #tpu.memory_space<vmem>>, vector<1x8x32xf32>,
    %c1_68 = arith.constant 1 : index
    %c0_69 = arith.constant 0 : index
    %c0_70 = arith.constant 0 : index
    %94 = vector.load %arg9[%c1_68, %c0_69, %c0_70] : memref<4x8x1xf32, #tpu.memory_space<vmem>>, vector<1x8x1xf32>
    %95 = vector.shape_cast %94 : vector<1x8x1xf32> to vector<8x1xf32>
    %96 = vector.shape_cast %68 : vector<8x1xf32> to vector<1x8x1xf32>
    tpu.vector_store %arg9[%c1_68, %c0_69, %c0_70], %96 {strides = array<i32>} : memref<4x8x1xf32, #tpu.memory_space<vmem>>, vector<1x8x1xf32>,
    %c0_71 = arith.constant 0 : index
    %c2 = arith.constant 2 : index
    %c0_72 = arith.constant 0 : index
    %97 = vector.load %arg8[%c0_71, %c2, %c0_72] : memref<8x4x32xf32, #tpu.memory_space<vmem>>, vector<8x1x32xf32>
    %98 = vector.shape_cast %97 : vector<8x1x32xf32> to vector<8x32xf32>
    %c0_73 = arith.constant 0 : index
    %c0_74 = arith.constant 0 : index
    %c0_75 = arith.constant 0 : index
    %c2_76 = arith.constant 2 : index
    %c0_77 = arith.constant 0 : index
    %99 = vector.load %arg5[%c0_73, %c0_74, %c0_75, %c2_76, %c0_77] : memref<1x8x1x4x32xf32, #tpu.memory_space<vmem>>, vector<1x8x1x1x32xf32>
    %100 = vector.shape_cast %99 : vector<1x8x1x1x32xf32> to vector<8x32xf32>
    %cst_78 = arith.constant dense<0.000000e+00> : vector<8x8xf32>
    %101 = tpu.matmul %98, %100, %cst_78 {dimension_numbers = #tpu.dot_dimension_numbers<[1], [1], [0], [0], [0, 0, 1, 0], [], []>} : vector<8x32xf32>, vector<8x32xf32>, vector<8x8xf32> -> vector<8x8xf32>
    %102 = arith.addf %101, %18 : vector<8x8xf32>
    %c2_79 = arith.constant 2 : index
    %c0_80 = arith.constant 0 : index
    %c0_81 = arith.constant 0 : index
    %103 = vector.load %arg9[%c2_79, %c0_80, %c0_81] : memref<4x8x1xf32, #tpu.memory_space<vmem>>, vector<1x8x1xf32>
    %104 = vector.shape_cast %103 : vector<1x8x1xf32> to vector<8x1xf32>
    %cst_82 = arith.constant dense<0xFF800000> : vector<8xf32>
    %105 = vector.multi_reduction <maximumf>, %102, %cst_82 [1] : vector<8x8xf32> to vector<8xf32>
    %106 = vector.shape_cast %105 : vector<8xf32> to vector<8x1xf32>
    %107 = arith.maximumf %104, %106 : vector<8x1xf32>
    %108 = arith.subf %104, %107 : vector<8x1xf32>
    %109 = math.exp %108 : vector<8x1xf32>
    %110 = vector.broadcast %107 : vector<8x1xf32> to vector<8x8xf32>
    %111 = arith.subf %102, %110 : vector<8x8xf32>
    %112 = math.exp %111 : vector<8x8xf32>
    %c2_83 = arith.constant 2 : index
    %c0_84 = arith.constant 0 : index
    %c0_85 = arith.constant 0 : index
    %113 = vector.load %arg10[%c2_83, %c0_84, %c0_85] : memref<4x8x1xf32, #tpu.memory_space<vmem>>, vector<1x8x1xf32>
    %114 = vector.shape_cast %113 : vector<1x8x1xf32> to vector<8x1xf32>
    %115 = arith.mulf %109, %114 : vector<8x1xf32>
    %cst_86 = arith.constant dense<0.000000e+00> : vector<8xf32>
    %116 = vector.multi_reduction <add>, %112, %cst_86 [1] : vector<8x8xf32> to vector<8xf32>
    %117 = vector.shape_cast %116 : vector<8xf32> to vector<8x1xf32>
    %118 = arith.addf %115, %117 : vector<8x1xf32>
    %c2_87 = arith.constant 2 : index
    %c0_88 = arith.constant 0 : index
    %c0_89 = arith.constant 0 : index
    %119 = vector.load %arg10[%c2_87, %c0_88, %c0_89] : memref<4x8x1xf32, #tpu.memory_space<vmem>>, vector<1x8x1xf32>
    %120 = vector.shape_cast %119 : vector<1x8x1xf32> to vector<8x1xf32>
    %121 = vector.shape_cast %118 : vector<8x1xf32> to vector<1x8x1xf32>
    tpu.vector_store %arg10[%c2_87, %c0_88, %c0_89], %121 {strides = array<i32>} : memref<4x8x1xf32, #tpu.memory_space<vmem>>, vector<1x8x1xf32>,
    %c2_90 = arith.constant 2 : index
    %c0_91 = arith.constant 0 : index
    %c0_92 = arith.constant 0 : index
    %122 = vector.load %arg11[%c2_90, %c0_91, %c0_92] : memref<4x8x32xf32, #tpu.memory_space<vmem>>, vector<1x8x32xf32>
    %123 = vector.shape_cast %122 : vector<1x8x32xf32> to vector<8x32xf32>
    %124 = vector.broadcast %109 : vector<8x1xf32> to vector<8x32xf32>
    %125 = arith.mulf %124, %123 : vector<8x32xf32>
    %c0_93 = arith.constant 0 : index
    %c0_94 = arith.constant 0 : index
    %c0_95 = arith.constant 0 : index
    %c2_96 = arith.constant 2 : index
    %c0_97 = arith.constant 0 : index
    %126 = vector.load %arg6[%c0_93, %c0_94, %c0_95, %c2_96, %c0_97] : memref<1x8x1x4x32xf32, #tpu.memory_space<vmem>>, vector<1x8x1x1x32xf32>
    %127 = vector.shape_cast %126 : vector<1x8x1x1x32xf32> to vector<8x32xf32>
    %cst_98 = arith.constant dense<0.000000e+00> : vector<8x32xf32>
    %128 = tpu.matmul %112, %127, %cst_98 {dimension_numbers = #tpu.dot_dimension_numbers<[1], [0], [0], [1], [0, 0, 1, 1], [], []>} : vector<8x8xf32>, vector<8x32xf32>, vector<8x32xf32> -> vector<8x32xf32>
    %129 = arith.addf %125, %128 : vector<8x32xf32>
    %c2_99 = arith.constant 2 : index
    %c0_100 = arith.constant 0 : index
    %c0_101 = arith.constant 0 : index
    %130 = vector.load %arg11[%c2_99, %c0_100, %c0_101] : memref<4x8x32xf32, #tpu.memory_space<vmem>>, vector<1x8x32xf32>
    %131 = vector.shape_cast %130 : vector<1x8x32xf32> to vector<8x32xf32>
    %132 = vector.shape_cast %129 : vector<8x32xf32> to vector<1x8x32xf32>
    tpu.vector_store %arg11[%c2_99, %c0_100, %c0_101], %132 {strides = array<i32>} : memref<4x8x32xf32, #tpu.memory_space<vmem>>, vector<1x8x32xf32>,
    %c2_102 = arith.constant 2 : index
    %c0_103 = arith.constant 0 : index
    %c0_104 = arith.constant 0 : index
    %133 = vector.load %arg9[%c2_102, %c0_103, %c0_104] : memref<4x8x1xf32, #tpu.memory_space<vmem>>, vector<1x8x1xf32>
    %134 = vector.shape_cast %133 : vector<1x8x1xf32> to vector<8x1xf32>
    %135 = vector.shape_cast %107 : vector<8x1xf32> to vector<1x8x1xf32>
    tpu.vector_store %arg9[%c2_102, %c0_103, %c0_104], %135 {strides = array<i32>} : memref<4x8x1xf32, #tpu.memory_space<vmem>>, vector<1x8x1xf32>,
    %c0_105 = arith.constant 0 : index
    %c3 = arith.constant 3 : index
    %c0_106 = arith.constant 0 : index
    %136 = vector.load %arg8[%c0_105, %c3, %c0_106] : memref<8x4x32xf32, #tpu.memory_space<vmem>>, vector<8x1x32xf32>
    %137 = vector.shape_cast %136 : vector<8x1x32xf32> to vector<8x32xf32>
    %c0_107 = arith.constant 0 : index
    %c0_108 = arith.constant 0 : index
    %c0_109 = arith.constant 0 : index
    %c3_110 = arith.constant 3 : index
    %c0_111 = arith.constant 0 : index
    %138 = vector.load %arg5[%c0_107, %c0_108, %c0_109, %c3_110, %c0_111] : memref<1x8x1x4x32xf32, #tpu.memory_space<vmem>>, vector<1x8x1x1x32xf32>
    %139 = vector.shape_cast %138 : vector<1x8x1x1x32xf32> to vector<8x32xf32>
    %cst_112 = arith.constant dense<0.000000e+00> : vector<8x8xf32>
    %140 = tpu.matmul %137, %139, %cst_112 {dimension_numbers = #tpu.dot_dimension_numbers<[1], [1], [0], [0], [0, 0, 1, 0], [], []>} : vector<8x32xf32>, vector<8x32xf32>, vector<8x8xf32> -> vector<8x8xf32>
    %141 = arith.addf %140, %18 : vector<8x8xf32>
    %c3_113 = arith.constant 3 : index
    %c0_114 = arith.constant 0 : index
    %c0_115 = arith.constant 0 : index
    %142 = vector.load %arg9[%c3_113, %c0_114, %c0_115] : memref<4x8x1xf32, #tpu.memory_space<vmem>>, vector<1x8x1xf32>
    %143 = vector.shape_cast %142 : vector<1x8x1xf32> to vector<8x1xf32>
    %cst_116 = arith.constant dense<0xFF800000> : vector<8xf32>
    %144 = vector.multi_reduction <maximumf>, %141, %cst_116 [1] : vector<8x8xf32> to vector<8xf32>
    %145 = vector.shape_cast %144 : vector<8xf32> to vector<8x1xf32>
    %146 = arith.maximumf %143, %145 : vector<8x1xf32>
    %147 = arith.subf %143, %146 : vector<8x1xf32>
    %148 = math.exp %147 : vector<8x1xf32>
    %149 = vector.broadcast %146 : vector<8x1xf32> to vector<8x8xf32>
    %150 = arith.subf %141, %149 : vector<8x8xf32>
    %151 = math.exp %150 : vector<8x8xf32>
    %c3_117 = arith.constant 3 : index
    %c0_118 = arith.constant 0 : index
    %c0_119 = arith.constant 0 : index
    %152 = vector.load %arg10[%c3_117, %c0_118, %c0_119] : memref<4x8x1xf32, #tpu.memory_space<vmem>>, vector<1x8x1xf32>
    %153 = vector.shape_cast %152 : vector<1x8x1xf32> to vector<8x1xf32>
    %154 = arith.mulf %148, %153 : vector<8x1xf32>
    %cst_120 = arith.constant dense<0.000000e+00> : vector<8xf32>
    %155 = vector.multi_reduction <add>, %151, %cst_120 [1] : vector<8x8xf32> to vector<8xf32>
    %156 = vector.shape_cast %155 : vector<8xf32> to vector<8x1xf32>
    %157 = arith.addf %154, %156 : vector<8x1xf32>
    %c3_121 = arith.constant 3 : index
    %c0_122 = arith.constant 0 : index
    %c0_123 = arith.constant 0 : index
    %158 = vector.load %arg10[%c3_121, %c0_122, %c0_123] : memref<4x8x1xf32, #tpu.memory_space<vmem>>, vector<1x8x1xf32>
    %159 = vector.shape_cast %158 : vector<1x8x1xf32> to vector<8x1xf32>
    %160 = vector.shape_cast %157 : vector<8x1xf32> to vector<1x8x1xf32>
    tpu.vector_store %arg10[%c3_121, %c0_122, %c0_123], %160 {strides = array<i32>} : memref<4x8x1xf32, #tpu.memory_space<vmem>>, vector<1x8x1xf32>,
    %c3_124 = arith.constant 3 : index
    %c0_125 = arith.constant 0 : index
    %c0_126 = arith.constant 0 : index
    %161 = vector.load %arg11[%c3_124, %c0_125, %c0_126] : memref<4x8x32xf32, #tpu.memory_space<vmem>>, vector<1x8x32xf32>
    %162 = vector.shape_cast %161 : vector<1x8x32xf32> to vector<8x32xf32>
    %163 = vector.broadcast %148 : vector<8x1xf32> to vector<8x32xf32>
    %164 = arith.mulf %163, %162 : vector<8x32xf32>
    %c0_127 = arith.constant 0 : index
    %c0_128 = arith.constant 0 : index
    %c0_129 = arith.constant 0 : index
    %c3_130 = arith.constant 3 : index
    %c0_131 = arith.constant 0 : index
    %165 = vector.load %arg6[%c0_127, %c0_128, %c0_129, %c3_130, %c0_131] : memref<1x8x1x4x32xf32, #tpu.memory_space<vmem>>, vector<1x8x1x1x32xf32>
    %166 = vector.shape_cast %165 : vector<1x8x1x1x32xf32> to vector<8x32xf32>
    %cst_132 = arith.constant dense<0.000000e+00> : vector<8x32xf32>
    %167 = tpu.matmul %151, %166, %cst_132 {dimension_numbers = #tpu.dot_dimension_numbers<[1], [0], [0], [1], [0, 0, 1, 1], [], []>} : vector<8x8xf32>, vector<8x32xf32>, vector<8x32xf32> -> vector<8x32xf32>
    %168 = arith.addf %164, %167 : vector<8x32xf32>
    %c3_133 = arith.constant 3 : index
    %c0_134 = arith.constant 0 : index
    %c0_135 = arith.constant 0 : index
    %169 = vector.load %arg11[%c3_133, %c0_134, %c0_135] : memref<4x8x32xf32, #tpu.memory_space<vmem>>, vector<1x8x32xf32>
    %170 = vector.shape_cast %169 : vector<1x8x32xf32> to vector<8x32xf32>
    %171 = vector.shape_cast %168 : vector<8x32xf32> to vector<1x8x32xf32>
    tpu.vector_store %arg11[%c3_133, %c0_134, %c0_135], %171 {strides = array<i32>} : memref<4x8x32xf32, #tpu.memory_space<vmem>>, vector<1x8x32xf32>,
    %c3_136 = arith.constant 3 : index
    %c0_137 = arith.constant 0 : index
    %c0_138 = arith.constant 0 : index
    %172 = vector.load %arg9[%c3_136, %c0_137, %c0_138] : memref<4x8x1xf32, #tpu.memory_space<vmem>>, vector<1x8x1xf32>
    %173 = vector.shape_cast %172 : vector<1x8x1xf32> to vector<8x1xf32>
    %174 = vector.shape_cast %146 : vector<8x1xf32> to vector<1x8x1xf32>
    tpu.vector_store %arg9[%c3_136, %c0_137, %c0_138], %174 {strides = array<i32>} : memref<4x8x1xf32, #tpu.memory_space<vmem>>, vector<1x8x1xf32>,
    %175 = arith.cmpi eq, %3, %1 : i32
    %176 = arith.extui %175 : i1 to i32
    %c0_i32_139 = arith.constant 0 : i32
    %177 = arith.cmpi ne, %176, %c0_i32_139 : i32
    scf.if %177 {
      %c0_140 = arith.constant 0 : index
      %c0_141 = arith.constant 0 : index
      %c0_142 = arith.constant 0 : index
      %178 = vector.load %arg10[%c0_140, %c0_141, %c0_142] : memref<4x8x1xf32, #tpu.memory_space<vmem>>, vector<1x8x1xf32>
      %179 = vector.shape_cast %178 : vector<1x8x1xf32> to vector<8x1xf32>
      %180 = tpu.reciprocal %179 : vector<8x1xf32> -> vector<8x1xf32>
      %c0_143 = arith.constant 0 : index
      %c0_144 = arith.constant 0 : index
      %c0_145 = arith.constant 0 : index
      %181 = vector.load %arg11[%c0_143, %c0_144, %c0_145] : memref<4x8x32xf32, #tpu.memory_space<vmem>>, vector<1x8x32xf32>
      %182 = vector.shape_cast %181 : vector<1x8x32xf32> to vector<8x32xf32>
      %183 = vector.broadcast %180 : vector<8x1xf32> to vector<8x32xf32>
      %184 = arith.mulf %182, %183 : vector<8x32xf32>
      %c0_146 = arith.constant 0 : index
      %c0_147 = arith.constant 0 : index
      %c0_148 = arith.constant 0 : index
      %185 = vector.load %arg7[%c0_146, %c0_147, %c0_148] : memref<1x8x128xf32, #tpu.memory_space<vmem>>, vector<1x8x32xf32>
      %186 = vector.shape_cast %185 : vector<1x8x32xf32> to vector<8x32xf32>
      %187 = vector.shape_cast %184 : vector<8x32xf32> to vector<1x8x32xf32>
      tpu.vector_store %arg7[%c0_146, %c0_147, %c0_148], %187 {strides = array<i32>} : memref<1x8x128xf32, #tpu.memory_space<vmem>>, vector<1x8x32xf32>,
      %c1_149 = arith.constant 1 : index
      %c0_150 = arith.constant 0 : index
      %c0_151 = arith.constant 0 : index
      %188 = vector.load %arg10[%c1_149, %c0_150, %c0_151] : memref<4x8x1xf32, #tpu.memory_space<vmem>>, vector<1x8x1xf32>
      %189 = vector.shape_cast %188 : vector<1x8x1xf32> to vector<8x1xf32>
      %190 = tpu.reciprocal %189 : vector<8x1xf32> -> vector<8x1xf32>
      %c1_152 = arith.constant 1 : index
      %c0_153 = arith.constant 0 : index
      %c0_154 = arith.constant 0 : index
      %191 = vector.load %arg11[%c1_152, %c0_153, %c0_154] : memref<4x8x32xf32, #tpu.memory_space<vmem>>, vector<1x8x32xf32>
      %192 = vector.shape_cast %191 : vector<1x8x32xf32> to vector<8x32xf32>
      %193 = vector.broadcast %190 : vector<8x1xf32> to vector<8x32xf32>
      %194 = arith.mulf %192, %193 : vector<8x32xf32>
      %c0_155 = arith.constant 0 : index
      %c0_156 = arith.constant 0 : index
      %c32 = arith.constant 32 : index
      %195 = vector.load %arg7[%c0_155, %c0_156, %c32] : memref<1x8x128xf32, #tpu.memory_space<vmem>>, vector<1x8x32xf32>
      %196 = vector.shape_cast %195 : vector<1x8x32xf32> to vector<8x32xf32>
      %197 = vector.shape_cast %194 : vector<8x32xf32> to vector<1x8x32xf32>
      tpu.vector_store %arg7[%c0_155, %c0_156, %c32], %197 {strides = array<i32>} : memref<1x8x128xf32, #tpu.memory_space<vmem>>, vector<1x8x32xf32>,
      %c2_157 = arith.constant 2 : index
      %c0_158 = arith.constant 0 : index
      %c0_159 = arith.constant 0 : index
      %198 = vector.load %arg10[%c2_157, %c0_158, %c0_159] : memref<4x8x1xf32, #tpu.memory_space<vmem>>, vector<1x8x1xf32>
      %199 = vector.shape_cast %198 : vector<1x8x1xf32> to vector<8x1xf32>
      %200 = tpu.reciprocal %199 : vector<8x1xf32> -> vector<8x1xf32>
      %c2_160 = arith.constant 2 : index
      %c0_161 = arith.constant 0 : index
      %c0_162 = arith.constant 0 : index
      %201 = vector.load %arg11[%c2_160, %c0_161, %c0_162] : memref<4x8x32xf32, #tpu.memory_space<vmem>>, vector<1x8x32xf32>
      %202 = vector.shape_cast %201 : vector<1x8x32xf32> to vector<8x32xf32>
      %203 = vector.broadcast %200 : vector<8x1xf32> to vector<8x32xf32>
      %204 = arith.mulf %202, %203 : vector<8x32xf32>
      %c0_163 = arith.constant 0 : index
      %c0_164 = arith.constant 0 : index
      %c64 = arith.constant 64 : index
      %205 = vector.load %arg7[%c0_163, %c0_164, %c64] : memref<1x8x128xf32, #tpu.memory_space<vmem>>, vector<1x8x32xf32>
      %206 = vector.shape_cast %205 : vector<1x8x32xf32> to vector<8x32xf32>
      %207 = vector.shape_cast %204 : vector<8x32xf32> to vector<1x8x32xf32>
      tpu.vector_store %arg7[%c0_163, %c0_164, %c64], %207 {strides = array<i32>} : memref<1x8x128xf32, #tpu.memory_space<vmem>>, vector<1x8x32xf32>,
      %c3_165 = arith.constant 3 : index
      %c0_166 = arith.constant 0 : index
      %c0_167 = arith.constant 0 : index
      %208 = vector.load %arg10[%c3_165, %c0_166, %c0_167] : memref<4x8x1xf32, #tpu.memory_space<vmem>>, vector<1x8x1xf32>
      %209 = vector.shape_cast %208 : vector<1x8x1xf32> to vector<8x1xf32>
      %210 = tpu.reciprocal %209 : vector<8x1xf32> -> vector<8x1xf32>
      %c3_168 = arith.constant 3 : index
      %c0_169 = arith.constant 0 : index
      %c0_170 = arith.constant 0 : index
      %211 = vector.load %arg11[%c3_168, %c0_169, %c0_170] : memref<4x8x32xf32, #tpu.memory_space<vmem>>, vector<1x8x32xf32>
      %212 = vector.shape_cast %211 : vector<1x8x32xf32> to vector<8x32xf32>
      %213 = vector.broadcast %210 : vector<8x1xf32> to vector<8x32xf32>
      %214 = arith.mulf %212, %213 : vector<8x32xf32>
      %c0_171 = arith.constant 0 : index
      %c0_172 = arith.constant 0 : index
      %c96 = arith.constant 96 : index
      %215 = vector.load %arg7[%c0_171, %c0_172, %c96] : memref<1x8x128xf32, #tpu.memory_space<vmem>>, vector<1x8x32xf32>
      %216 = vector.shape_cast %215 : vector<1x8x32xf32> to vector<8x32xf32>
      %217 = vector.shape_cast %214 : vector<8x32xf32> to vector<1x8x32xf32>
      tpu.vector_store %arg7[%c0_171, %c0_172, %c96], %217 {strides = array<i32>} : memref<1x8x128xf32, #tpu.memory_space<vmem>>, vector<1x8x32xf32>,
    } else {
    }
    return
  }
  func.func @transform_0(%arg0: i32, %arg1: i32, %arg2: memref<1xi32, #tpu.memory_space<smem>>, %arg3: memref<1xi32, #tpu.memory_space<smem>>) -> (i32, i32, i32, i32, i32) {
    %0 = arith.index_cast %arg1 : i32 to index
    %1 = memref.load %arg2[%0] : memref<1xi32, #tpu.memory_space<smem>>
    %c0_i32 = arith.constant 0 : i32
    %c0_i32_0 = arith.constant 0 : i32
    %c0_i32_1 = arith.constant 0 : i32
    %c0_i32_2 = arith.constant 0 : i32
    return %arg0, %1, %c0_i32, %c0_i32_0, %c0_i32_1 : i32, i32, i32, i32, i32
  }
  func.func @transform_1(%arg0: i32, %arg1: i32, %arg2: memref<1xi32, #tpu.memory_space<smem>>, %arg3: memref<1xi32, #tpu.memory_space<smem>>) -> (i32, i32, i32, i32, i32) {
    %0 = arith.index_cast %arg1 : i32 to index
    %1 = memref.load %arg3[%0] : memref<1xi32, #tpu.memory_space<smem>>
    %c1_i32 = arith.constant 1 : i32
    %c0_i32 = arith.constant 0 : i32
    %c0_i32_0 = arith.constant 0 : i32
    %c0_i32_1 = arith.constant 0 : i32
    return %arg0, %1, %c1_i32, %c0_i32, %c0_i32_0 : i32, i32, i32, i32, i32
  }
  func.func @transform_2(%arg0: i32, %arg1: i32, %arg2: memref<1xi32, #tpu.memory_space<smem>>, %arg3: memref<1xi32, #tpu.memory_space<smem>>) -> (i32, i32, i32, i32, i32) {
    %0 = arith.index_cast %arg1 : i32 to index
    %1 = memref.load %arg3[%0] : memref<1xi32, #tpu.memory_space<smem>>
    %c2_i32 = arith.constant 2 : i32
    %c0_i32 = arith.constant 0 : i32
    %c0_i32_0 = arith.constant 0 : i32
    %c0_i32_1 = arith.constant 0 : i32
    return %arg0, %1, %c2_i32, %c0_i32, %c0_i32_0 : i32, i32, i32, i32, i32
  }
  func.func @transform_3(%arg0: i32, %arg1: i32, %arg2: memref<1xi32, #tpu.memory_space<smem>>, %arg3: memref<1xi32, #tpu.memory_space<smem>>) -> (i32, i32, i32) {
    %0 = arith.index_cast %arg1 : i32 to index
    %1 = memref.load %arg2[%0] : memref<1xi32, #tpu.memory_space<smem>>
    %c0_i32 = arith.constant 0 : i32
    %c0_i32_0 = arith.constant 0 : i32
    return %arg0, %1, %c0_i32 : i32, i32, i32
  }
}

</mosaic_0001>

<llo_original>
// kernel: tpu_custom_call.1
$region0: #{tpu_custom_call.1}
  #allocation0 [shape = 'u32[]', space=smem, size = 0x4, offset = 0x4, fixed_abs, tag = 'smem constant byte address 0x4 - core index']
  #allocation1 [shape = 'u32[72,128]{1,0:T(1,128)}', space=vmem, size = 0x9000, scoped, tag = 'internal scratch']
  #allocation2 [shape = 'f32[8,4,32]{2,1,0:T(4,128)}', space=vmem, size = 0x4000, scoped, tag = 'scratch operand']
  #allocation3 [shape = 'f32[4,8,1]{2,1,0:T(8,128)}', space=vmem, size = 0x4000, scoped, tag = 'scratch operand']
  #allocation4 [shape = 'f32[4,8,1]{2,1,0:T(8,128)}', space=vmem, size = 0x4000, scoped, tag = 'scratch operand']
  #allocation5 [shape = 'f32[4,8,32]{2,1,0:T(8,128)}', space=vmem, size = 0x4000, scoped, tag = 'scratch operand']
  #allocation6 [shape = 's32[1]{0}', space=sflag, size = 0x4, scoped, tag = 'scoped memory for tpu_custom_call.1']
  #allocation7 [shape = 's32[1]{0:T(128)S(6)}', space=smem, size = 0x200, scoped, tag = 'prefetched SMEM operand 0']
  #allocation8 [shape = 's32[1]{0:T(128)S(6)}', space=smem, size = 0x200, scoped, tag = 'prefetched SMEM operand 1']
  %s0 = inlined_call_operand.<no memory space> [shape: s32[1], index: 0, kind: input, shape index: {}]
  %s1 = inlined_call_operand.<no memory space> [shape: s32[1], index: 1, kind: input, shape index: {}]
  %s2 = inlined_call_operand.hbm [shape: f32[2,8,3,4,32], index: 2, kind: input, shape index: {}]
  %s3 = inlined_call_operand.hbm [shape: f32[2,8,3,4,32], index: 3, kind: input, shape index: {}]
  %s4 = inlined_call_operand.hbm [shape: f32[2,8,3,4,32], index: 4, kind: input, shape index: {}]
  %s5 = inlined_call_operand.hbm [shape: f32[2,8,128], index: 5, kind: output, shape index: {}]
  %s6 = sld [smem:[#allocation0]]
  $region65: #{tpu_custom_call.1} parent=0
    _
  %s8 = ssub.s32 1, %s6
  %s9 = scalar_select 0, %s8, %s6
  %10 = sst [smem:[#allocation7]] %s0
  %11 = sst [smem:[#allocation8]] %s1
  $region1: #{tpu_custom_call.1} parent=0
    #allocation9 [shape = 'u8[32768]{0}', space=vmem, size = 0x8000, scoped, tag = 'input window, operand 2']
    #allocation10 [shape = 's32[2]{0}', space=sflag, size = 0x8, scoped, tag = 'scoped memory for tpu_custom_call.1']
    #allocation11 [shape = 's32[2]{0}', space=sflag, size = 0x8, scoped, tag = 'scoped memory for tpu_custom_call.1']
    #allocation12 [shape = 'u8[32768]{0}', space=vmem, size = 0x8000, scoped, tag = 'input window, operand 3']
    #allocation13 [shape = 's32[2]{0}', space=sflag, size = 0x8, scoped, tag = 'scoped memory for tpu_custom_call.1']
    #allocation14 [shape = 'u8[32768]{0}', space=vmem, size = 0x8000, scoped, tag = 'input window, operand 4']
    #allocation15 [shape = 'u8[8192]{0}', space=vmem, size = 0x2000, scoped, tag = 'output window, operand 0']
    %12 = vsyncpa [#allocation10], 0
    %s13 = scalar_lea.sflag [#allocation10], 1
    %14 = vsyncpa %s13, 0
    %15 = vsyncpa [#allocation13], 0
    %s16 = scalar_lea.sflag [#allocation13], 1
    %17 = vsyncpa %s16, 0
    %18 = vsyncpa [#allocation11], 0
    %s19 = scalar_lea.sflag [#allocation11], 1
    %20 = vsyncpa %s19, 0
    loop: start=0, step=1, limit=4
    $region2: #{tpu_custom_call.1} parent=1 // loop_pre_header
      _
    $region3: #{tpu_custom_call.1} parent=1 // loop_header
      %s22 = sphi 0, %s26
      %p23 = scmp.ge.s32.totalorder %s22, 4
      %s29 = sphi 0, %s41
      %s30 = sphi 0, %s37
      %s31 = sphi 0, %s29
      %s32 = sphi 0, %s30
      %s33 = sphi 0, %s31
      %s34 = sphi 0, %s32
      %s48 = sphi 0, %s50
      %s51 = sphi 0, %s48
      %s52 = sphi 0, %s51
      %s68 = sphi 0, %s52
      %s78 = sphi 0, %s80
      %s81 = sphi 0, %s78
      %s82 = sphi 0, %s81
      %s98 = sphi 0, %s82
      %s108 = sphi 0, %s110
      %s111 = sphi 0, %s108
      %s112 = sphi 0, %s111
      %s128 = sphi 0, %s112
      %s138 = sphi 0, %s140
      %s141 = sphi 0, %s138
      %s142 = sphi 0, %s141
      %s158 = sphi 0, %s142
    $region4: #{tpu_custom_call.1} parent=1 // loop_header_branch
      %25 = sbr.rel (%p23) target = $region8
    $region5: #{tpu_custom_call.1} parent=1 // loop_body
      %s27 = ssub.s32 %s22, 1
      %s28 = ssub.s32 %s22, 2
      %s35 = sadd.s32 1, %s30
      %p36 = scmp.ge.s32.totalorder %s35, 1
      %s37 = scalar_select %p36, 0, %s35
      %s38 = sadd.s32 1, %s29
      %s39 = scalar_select %p36, %s38, %s29
      %p40 = scmp.ge.s32.totalorder %s39, 2
      %s41 = scalar_select %p40, 0, %s39
      %s42 = sld [smem:[#allocation7 + %s30]]
      %s43 = sld [smem:[#allocation7 + %s37]]
      %s44 = ssub.s32 %s29, %s41
      %s45 = ssub.s32 %s42, %s43
      %s46 = sor.u32 %s44, %s45
      %p47 = scmp.eq.s32.totalorder %s46, 0
      %s49 = sadd.s32 %s48, 1
      %s50 = scalar_select %p47, %s48, %s49
      %p53 = pneg %p47
      %p54 = scmp.eq.s32.totalorder %s22, 1
      %p55 = por %p53, %p54
      %p56 = scmp.ne.s32.totalorder %s48, %s51
      %p57 = scmp.eq.s32.totalorder %s22, 0
      %p58 = por %p56, %p57
      %p59 = scmp.ne.s32.totalorder %s48, %s51
      %p60 = scmp.eq.s32.totalorder %s27, 1
      %p61 = por %p59, %p60
      %p62 = scmp.ne.s32.totalorder %s51, %s52
      %p63 = scmp.eq.s32.totalorder %s27, 0
      %p64 = por %p62, %p63
      %p65 = scmp.ne.s32.totalorder %s51, %s52
      %p66 = scmp.eq.s32.totalorder %s28, 1
      %p67 = por %p65, %p66
      %p69 = scmp.ne.s32.totalorder %s52, %s68
      %p70 = scmp.eq.s32.totalorder %s28, 0
      %p71 = por %p69, %p70
      %s72 = sld [smem:[#allocation8 + %s30]]
      %s73 = sld [smem:[#allocation8 + %s37]]
      %s74 = ssub.s32 %s29, %s41
      %s75 = ssub.s32 %s72, %s73
      %s76 = sor.u32 %s74, %s75
      %p77 = scmp.eq.s32.totalorder %s76, 0
      %s79 = sadd.s32 %s78, 1
      %s80 = scalar_select %p77, %s78, %s79
      %p83 = pneg %p77
      %p84 = scmp.eq.s32.totalorder %s22, 1
      %p85 = por %p83, %p84
      %p86 = scmp.ne.s32.totalorder %s78, %s81
      %p87 = scmp.eq.s32.totalorder %s22, 0
      %p88 = por %p86, %p87
      %p89 = scmp.ne.s32.totalorder %s78, %s81
      %p90 = scmp.eq.s32.totalorder %s27, 1
      %p91 = por %p89, %p90
      %p92 = scmp.ne.s32.totalorder %s81, %s82
      %p93 = scmp.eq.s32.totalorder %s27, 0
      %p94 = por %p92, %p93
      %p95 = scmp.ne.s32.totalorder %s81, %s82
      %p96 = scmp.eq.s32.totalorder %s28, 1
      %p97 = por %p95, %p96
      %p99 = scmp.ne.s32.totalorder %s82, %s98
      %p100 = scmp.eq.s32.totalorder %s28, 0
      %p101 = por %p99, %p100
      %s102 = sld [smem:[#allocation8 + %s30]]
      %s103 = sld [smem:[#allocation8 + %s37]]
      %s104 = ssub.s32 %s29, %s41
      %s105 = ssub.s32 %s102, %s103
      %s106 = sor.u32 %s104, %s105
      %p107 = scmp.eq.s32.totalorder %s106, 0
      %s109 = sadd.s32 %s108, 1
      %s110 = scalar_select %p107, %s108, %s109
      %p113 = pneg %p107
      %p114 = scmp.eq.s32.totalorder %s22, 1
      %p115 = por %p113, %p114
      %p116 = scmp.ne.s32.totalorder %s108, %s111
      %p117 = scmp.eq.s32.totalorder %s22, 0
      %p118 = por %p116, %p117
      %p119 = scmp.ne.s32.totalorder %s108, %s111
      %p120 = scmp.eq.s32.totalorder %s27, 1
      %p121 = por %p119, %p120
      %p122 = scmp.ne.s32.totalorder %s111, %s112
      %p123 = scmp.eq.s32.totalorder %s27, 0
      %p124 = por %p122, %p123
      %p125 = scmp.ne.s32.totalorder %s111, %s112
      %p126 = scmp.eq.s32.totalorder %s28, 1
      %p127 = por %p125, %p126
      %p129 = scmp.ne.s32.totalorder %s112, %s128
      %p130 = scmp.eq.s32.totalorder %s28, 0
      %p131 = por %p129, %p130
      %s132 = sld [smem:[#allocation7 + %s30]]
      %s133 = sld [smem:[#allocation7 + %s37]]
      %s134 = ssub.s32 %s29, %s41
      %s135 = ssub.s32 %s132, %s133
      %s136 = sor.u32 %s134, %s135
      %p137 = scmp.eq.s32.totalorder %s136, 0
      %s139 = sadd.s32 %s138, 1
      %s140 = scalar_select %p137, %s138, %s139
      %p143 = pneg %p137
      %p144 = scmp.eq.s32.totalorder %s22, 1
      %p145 = por %p143, %p144
      %p146 = scmp.ne.s32.totalorder %s138, %s141
      %p147 = scmp.eq.s32.totalorder %s22, 0
      %p148 = por %p146, %p147
      %p149 = scmp.ne.s32.totalorder %s138, %s141
      %p150 = scmp.eq.s32.totalorder %s27, 1
      %p151 = por %p149, %p150
      %p152 = scmp.ne.s32.totalorder %s141, %s142
      %p153 = scmp.eq.s32.totalorder %s27, 0
      %p154 = por %p152, %p153
      %p155 = scmp.ne.s32.totalorder %s141, %s142
      %p156 = scmp.eq.s32.totalorder %s28, 1
      %p157 = por %p155, %p156
      %p159 = scmp.ne.s32.totalorder %s142, %s158
      %p160 = scmp.eq.s32.totalorder %s28, 0
      %p161 = por %p159, %p160
      %p162 = scmp.le.s32.totalorder 1, %s22
      %p163 = scmp.lt.s32.totalorder %s22, 3
      %p164 = pnand %p162, %p163
      %p165 = pneg %p164
      // Predicated region
      $region9: #{tpu_custom_call.1} parent=5 // pred_check
        _
      $region10: #{tpu_custom_call.1} parent=5 // pred_check_branch
        %167 = sbr.rel (%p164) target = $region12
      $region11: #{tpu_custom_call.1} parent=5 // pred_region
        %s168 = ssub.s32 %s22, 1
      $region12: #{tpu_custom_call.1} parent=5 // pred_fallthru
        _
      %p169 = scmp.lt.s32.totalorder %s22, 2
      // Predicated region
      $region13: #{tpu_custom_call.1} parent=5 // pred_check
        %p170 = pneg %p169
      $region14: #{tpu_custom_call.1} parent=5 // pred_check_branch
        %172 = sbr.rel (%p170) target = $region16
      $region15: #{tpu_custom_call.1} parent=5 // pred_region
        // Predicated region
        $region17: #{tpu_custom_call.1} parent=15 // pred_check
          %p173 = pneg %p58
        $region18: #{tpu_custom_call.1} parent=15 // pred_check_branch
          %175 = sbr.rel (%p173) target = $region20
        $region19: #{tpu_custom_call.1} parent=15 // pred_region
          %s176 = sand.u32 %s48, 1
          %s177 = scalar_lea.sflag [#allocation10], %s176
          %s178 = sand.u32 %s48, 1
          %s179 = smul.addr %s178, 32
          %s180 = scalar_lea.vmem [#allocation9], %s179
          %s181 = sld [smem:[#allocation7 + %s30]]
          %s182 = smul.u32 8, %s181
          %184 = vsyncadd %s177, 0
          %s185 = smul.addr %s182, 3
          %s186 = smul.addr %s29, 24
          %s187 = sadd.s32 %s185, %s186
          %s188 = smul.addr %s187, 4
          %s189 = scalar_lea.hbm %s2, %s188
          %s190 = sshll.u32 %s189, 4
          %s191 = int_to_ptr.hbm [resolvable:$true] %s190
          %s192 = sshll.u32 %s180, 4
          %s193 = int_to_ptr.vmem [resolvable:$true] %s192
          %198 = dma.hbm_to_vmem [thread:$0]  %s191, 512, %s193, %s177, 192, 64, 4
        $region20: #{tpu_custom_call.1} parent=15 // pred_fallthru
          _
        // Predicated region
        $region21: #{tpu_custom_call.1} parent=15 // pred_check
          %p199 = pneg %p88
        $region22: #{tpu_custom_call.1} parent=15 // pred_check_branch
          %201 = sbr.rel (%p199) target = $region24
        $region23: #{tpu_custom_call.1} parent=15 // pred_region
          %s202 = sand.u32 %s22, 1
          %s203 = scalar_lea.sflag [#allocation13], %s202
          %s204 = sand.u32 %s78, 1
          %s205 = smul.addr %s204, 32
          %s206 = scalar_lea.vmem [#allocation12], %s205
          %s207 = sld [smem:[#allocation8 + %s30]]
          %s208 = smul.u32 8, %s207
          %210 = vsyncadd %s203, 0
          %s211 = smul.addr %s208, 3
          %s212 = sadd.s32 1, %s211
          %s213 = smul.addr %s29, 24
          %s214 = sadd.s32 %s212, %s213
          %s215 = smul.addr %s214, 4
          %s216 = scalar_lea.hbm %s3, %s215
          %s217 = sshll.u32 %s216, 4
          %s218 = int_to_ptr.hbm [resolvable:$true] %s217
          %s219 = sshll.u32 %s206, 4
          %s220 = int_to_ptr.vmem [resolvable:$true] %s219
          %225 = dma.hbm_to_vmem [thread:$0]  %s218, 512, %s220, %s203, 192, 64, 4
        $region24: #{tpu_custom_call.1} parent=15 // pred_fallthru
          _
        // Predicated region
        $region25: #{tpu_custom_call.1} parent=15 // pred_check
          %p226 = pneg %p118
        $region26: #{tpu_custom_call.1} parent=15 // pred_check_branch
          %228 = sbr.rel (%p226) target = $region28
        $region27: #{tpu_custom_call.1} parent=15 // pred_region
          %s229 = sand.u32 %s22, 1
          %s230 = scalar_lea.sflag [#allocation13], %s229
          %s231 = sand.u32 %s108, 1
          %s232 = smul.addr %s231, 32
          %s233 = scalar_lea.vmem [#allocation14], %s232
          %s234 = sld [smem:[#allocation8 + %s30]]
          %s235 = smul.u32 8, %s234
          %237 = vsyncadd %s230, 0
          %s238 = smul.addr %s235, 3
          %s239 = sadd.s32 2, %s238
          %s240 = smul.addr %s29, 24
          %s241 = sadd.s32 %s239, %s240
          %s242 = smul.addr %s241, 4
          %s243 = scalar_lea.hbm %s4, %s242
          %s244 = sshll.u32 %s243, 4
          %s245 = int_to_ptr.hbm [resolvable:$true] %s244
          %s246 = sshll.u32 %s233, 4
          %s247 = int_to_ptr.vmem [resolvable:$true] %s246
          %252 = dma.hbm_to_vmem [thread:$0]  %s245, 512, %s247, %s230, 192, 64, 4
        $region28: #{tpu_custom_call.1} parent=15 // pred_fallthru
          _
      $region16: #{tpu_custom_call.1} parent=5 // pred_fallthru
        _
      %p253 = scmp.le.s32.totalorder 1, %s22
      %p254 = scmp.lt.s32.totalorder %s22, 3
      %p255 = pnand %p253, %p254
      %p256 = pneg %p255
      // Predicated region
      $region29: #{tpu_custom_call.1} parent=5 // pred_check
        _
      $region30: #{tpu_custom_call.1} parent=5 // pred_check_branch
        %258 = sbr.rel (%p255) target = $region32
      $region31: #{tpu_custom_call.1} parent=5 // pred_region
        %s259 = ssub.s32 %s22, 1
        %s260 = sand.u32 %s51, 1
        %s261 = scalar_lea.sflag [#allocation10], %s260
        %s262 = sand.u32 %s51, 1
        %s263 = smul.addr %s262, 32
        %s264 = scalar_lea.vmem [#allocation9], %s263
        // Predicated region
        $region33: #{tpu_custom_call.1} parent=31 // pred_check
          %p265 = pneg %p64
        $region34: #{tpu_custom_call.1} parent=31 // pred_check_branch
          %267 = sbr.rel (%p265) target = $region36
        $region35: #{tpu_custom_call.1} parent=31 // pred_region
          %269 = dma.done %s261, 512
        $region36: #{tpu_custom_call.1} parent=31 // pred_fallthru
          _
        %s270 = sand.u32 %s27, 1
        %s271 = scalar_lea.sflag [#allocation13], %s270
        %s272 = sand.u32 %s81, 1
        %s273 = smul.addr %s272, 32
        %s274 = scalar_lea.vmem [#allocation12], %s273
        // Predicated region
        $region37: #{tpu_custom_call.1} parent=31 // pred_check
          %p275 = pneg %p94
        $region38: #{tpu_custom_call.1} parent=31 // pred_check_branch
          %277 = sbr.rel (%p275) target = $region40
        $region39: #{tpu_custom_call.1} parent=31 // pred_region
          %279 = dma.done %s271, 512
        $region40: #{tpu_custom_call.1} parent=31 // pred_fallthru
          _
        %s280 = sand.u32 %s27, 1
        %s281 = scalar_lea.sflag [#allocation13], %s280
        %s282 = sand.u32 %s111, 1
        %s283 = smul.addr %s282, 32
        %s284 = scalar_lea.vmem [#allocation14], %s283
        // Predicated region
        $region41: #{tpu_custom_call.1} parent=31 // pred_check
          %p285 = pneg %p124
        $region42: #{tpu_custom_call.1} parent=31 // pred_check_branch
          %287 = sbr.rel (%p285) target = $region44
        $region43: #{tpu_custom_call.1} parent=31 // pred_region
          %289 = dma.done %s281, 512
        $region44: #{tpu_custom_call.1} parent=31 // pred_fallthru
          _
        %s290 = sand.u32 %s51, 1
        %s291 = scalar_lea.sflag [#allocation10], %s290
        %s292 = sand.u32 %s51, 1
        %s293 = smul.addr %s292, 32
        %s294 = scalar_lea.vmem [#allocation9], %s293
        %p295 = pneg %p64
        %p296 = pneg %p61
        %s297 = sand.u32 %s27, 1
        %s298 = scalar_lea.sflag [#allocation13], %s297
        %s299 = sand.u32 %s81, 1
        %s300 = smul.addr %s299, 32
        %s301 = scalar_lea.vmem [#allocation12], %s300
        %p302 = pneg %p94
        %p303 = pneg %p91
        %s304 = sand.u32 %s27, 1
        %s305 = scalar_lea.sflag [#allocation13], %s304
        %s306 = sand.u32 %s111, 1
        %s307 = smul.addr %s306, 32
        %s308 = scalar_lea.vmem [#allocation14], %s307
        %p309 = pneg %p124
        %p310 = pneg %p121
        %p311 = pneg %p154
        %p312 = pneg %p151
        %s313 = sand.u32 %s141, 1
        %s314 = scalar_lea.sflag [#allocation11], %s313
        %s315 = sand.u32 %s141, 1
        %s316 = smul.addr %s315, 8
        %s317 = scalar_lea.vmem [#allocation15], %s316
        %s318 = sld [smem:[#allocation7 + %s32]]
        %s319 = smul.u32 8, %s318
        %s320 = sld [smem:[#allocation8 + %s32]]
        %s321 = smul.u32 8, %s320
        %s322 = sld [smem:[#allocation8 + %s32]]
        %s323 = smul.u32 8, %s322
        %s324 = sld [smem:[#allocation7 + %s32]]
        %s325 = sld [smem:[#allocation7 + %s32]]
        %s326 = sld [smem:[#allocation8 + %s32]]
        %p327 = scmp.eq.s32.totalorder %s326, 0
        // Predicated region
        $region45: #{tpu_custom_call.1} parent=31 // pred_check
          %p328 = pneg %p327
        $region46: #{tpu_custom_call.1} parent=31 // pred_check_branch
          %330 = sbr.rel (%p328) target = $region48
        $region47: #{tpu_custom_call.1} parent=31 // pred_region
          %v331 = vld [vmem:[%s264] sm:$0xf]
          %v332 = vld [vmem:[%s264 + $0x4] sm:$0xf]
          %v333 = vld [vmem:[%s264 + $0x8] sm:$0xf]
          %v334 = vld [vmem:[%s264 + $0xc] sm:$0xf]
          %v335 = vld [vmem:[%s264 + $0x10] sm:$0xf]
          %v336 = vld [vmem:[%s264 + $0x14] sm:$0xf]
          %v337 = vld [vmem:[%s264 + $0x18] sm:$0xf]
          %v338 = vld [vmem:[%s264 + $0x1c] sm:$0xf]
          %v339 = vmul.f32 %v331, 0.17677669
          %v340 = vmul.f32 %v332, 0.17677669
          %v341 = vmul.f32 %v333, 0.17677669
          %v342 = vmul.f32 %v334, 0.17677669
          %v343 = vmul.f32 %v335, 0.17677669
          %v344 = vmul.f32 %v336, 0.17677669
          %v345 = vmul.f32 %v337, 0.17677669
          %v346 = vmul.f32 %v338, 0.17677669
          %vm347 = vcmask 257024
          %348 = vst.msk [vmem:[#allocation2] sm:$0xf] %vm347, %v339
          %349 = vst.msk [vmem:[#allocation2 + $0x4] sm:$0xf] %vm347, %v340
          %350 = vst.msk [vmem:[#allocation2 + $0x8] sm:$0xf] %vm347, %v341
          %351 = vst.msk [vmem:[#allocation2 + $0xc] sm:$0xf] %vm347, %v342
          %352 = vst.msk [vmem:[#allocation2 + $0x10] sm:$0xf] %vm347, %v343
          %353 = vst.msk [vmem:[#allocation2 + $0x14] sm:$0xf] %vm347, %v344
          %354 = vst.msk [vmem:[#allocation2 + $0x18] sm:$0xf] %vm347, %v345
          %355 = vst.msk [vmem:[#allocation2 + $0x1c] sm:$0xf] %vm347, %v346
          %vm356 = vcmask 7168
          %357 = vst.msk [vmem:[#allocation3] sm:$0xff] %vm356, -inf
          %358 = vst.msk [vmem:[#allocation3 + $0x8] sm:$0xff] %vm356, -inf
          %359 = vst.msk [vmem:[#allocation3 + $0x10] sm:$0xff] %vm356, -inf
          %360 = vst.msk [vmem:[#allocation3 + $0x18] sm:$0xff] %vm356, -inf
          %361 = vst.msk [vmem:[#allocation4] sm:$0xff] %vm356, 0.0
          %362 = vst.msk [vmem:[#allocation4 + $0x8] sm:$0xff] %vm356, 0.0
          %363 = vst.msk [vmem:[#allocation4 + $0x10] sm:$0xff] %vm356, 0.0
          %364 = vst.msk [vmem:[#allocation4 + $0x18] sm:$0xff] %vm356, 0.0
          %vm365 = vcmask 261120
          %366 = vst.msk [vmem:[#allocation5] sm:$0xff] %vm365, 0.0
          %367 = vst.msk [vmem:[#allocation5 + $0x8] sm:$0xff] %vm365, 0.0
          %368 = vst.msk [vmem:[#allocation5 + $0x10] sm:$0xff] %vm365, 0.0
          %369 = vst.msk [vmem:[#allocation5 + $0x18] sm:$0xff] %vm365, 0.0
        $region48: #{tpu_custom_call.1} parent=31 // pred_fallthru
          _
        %v370 = vlaneseq
        %v371 = vshrl.u32 %v370, 7
        %s372 = smul.u32 %s325, 8
        %v373 = vstv %s372
        %v374 = vadd.s32 %v371, %v373
        %v375 = vlaneseq
        %v376 = vand.u32 %v375, 127
        %s377 = smul.u32 %s326, 8
        %v378 = vstv %s377
        %v379 = vadd.s32 %v376, %v378
        %vm380 = vcmp.gt.s32.totalorder %v379, %v374
        %v381 = vsel %vm380, -10000.0, 0.0
        %v382 = vld [vmem:[#allocation2] sm:$0x1]
        %v383 = vld [vmem:[#allocation2 + $0x4] sm:$0x1]
        %v384 = vld [vmem:[#allocation2 + $0x8] sm:$0x1]
        %v385 = vld [vmem:[#allocation2 + $0xc] sm:$0x1]
        %v386 = vld [vmem:[#allocation2 + $0x10] sm:$0x1]
        %v387 = vld [vmem:[#allocation2 + $0x14] sm:$0x1]
        %v388 = vld [vmem:[#allocation2 + $0x18] sm:$0x1]
        %v389 = vld [vmem:[#allocation2 + $0x1c] sm:$0x1]
        %v390 = vld [vmem:[%s274] sm:$0x1]
        %v391 = vld [vmem:[%s274 + $0x4] sm:$0x1]
        %v392 = vld [vmem:[%s274 + $0x8] sm:$0x1]
        %v393 = vld [vmem:[%s274 + $0xc] sm:$0x1]
        %v394 = vld [vmem:[%s274 + $0x10] sm:$0x1]
        %v395 = vld [vmem:[%s274 + $0x14] sm:$0x1]
        %v396 = vld [vmem:[%s274 + $0x18] sm:$0x1]
        %v397 = vld [vmem:[%s274 + $0x1c] sm:$0x1]
        %v406 = vrot.slane %v383, 7
        %vm407 = vcmask 1041409
        %v408 = vsel %vm407, %v406, %v382
        %v409 = vrot.slane %v384, 6
        %vm410 = vcmask 1042434
        %v411 = vsel %vm410, %v409, %v408
        %v412 = vrot.slane %v385, 5
        %vm413 = vcmask 1043459
        %v414 = vsel %vm413, %v412, %v411
        %v415 = vrot.slane %v386, 4
        %vm416 = vcmask 1044484
        %v417 = vsel %vm416, %v415, %v414
        %v418 = vrot.slane %v387, 3
        %vm419 = vcmask 1045509
        %v420 = vsel %vm419, %v418, %v417
        %v421 = vrot.slane %v388, 2
        %vm422 = vcmask 1046534
        %v423 = vsel %vm422, %v421, %v420
        %v424 = vrot.slane %v389, 1
        %vm425 = vcmask 1047559
        %v426 = vsel %vm425, %v424, %v423
        %v435 = vrot.slane %v391, 7
        %v436 = vsel %vm407, %v435, %v390
        %v437 = vrot.slane %v392, 6
        %v438 = vsel %vm410, %v437, %v436
        %v439 = vrot.slane %v393, 5
        %v440 = vsel %vm413, %v439, %v438
        %v441 = vrot.slane %v394, 4
        %v442 = vsel %vm416, %v441, %v440
        %v443 = vrot.slane %v395, 3
        %v444 = vsel %vm419, %v443, %v442
        %v445 = vrot.slane %v396, 2
        %v446 = vsel %vm422, %v445, %v444
        %v447 = vrot.slane %v397, 1
        %v448 = vsel %vm425, %v447, %v446
        %vm449 = vcmask 261120
        %v450 = vsel %vm449, %v426, 0
        %v452 = vsel %vm449, %v448, 0
        %454 = vmatpush.xpose.msra.mxu0 0.0
        %455 = vmatpush.xpose.msra.mxu0 0.0
        %456 = vmatpush.xpose.msra.mxu0 0.0
        %457 = vmatpush.xpose.msra.mxu0 0.0
        %458 = vmatpush.xpose.msra.mxu0 0.0
        %459 = vmatpush.xpose.msra.mxu0 0.0
        %460 = vmatpush.xpose.msra.mxu0 0.0
        %461 = vmatpush.xpose.msra.mxu0 0.0
        %462 = vmatpush.xpose.msra.mxu0 0.0
        %463 = vmatpush.xpose.msra.mxu0 0.0
        %464 = vmatpush.xpose.msra.mxu0 0.0
        %465 = vmatpush.xpose.msra.mxu0 0.0
        %466 = vmatpush.xpose.msra.mxu0 0.0
        %467 = vmatpush.xpose.msra.mxu0 0.0
        %468 = vmatpush.xpose.msra.mxu0 0.0
        %469 = vmatpush.xpose.msra.mxu0 %v452
        %470 = vmatmul.f32.gmra.mxu0 %v450
        %v471 = vpop.f32.mrf.mxu0
        %v472 = vadd.f32 %v381, %v471
        %473 = vdwg.mxu0
        %v474 = vld [vmem:[#allocation3] sm:$0xff]
        %vm475 = vcmask 64512
        %v476 = vsel %vm475, %v472, -inf
        %477 = vmax.xlane.f32.xlu0 %v476
        %v478 = vpop.xlane.xlu0 %477
        %v479 = vmax.f32 %v474, %v478
        %v480 = vsub.f32 %v474, %v479
        %v481 = vmul.f32 %v480, 1.442695
        %v482 = vpow.pop %v481
        %484 = vset.pattern.permute.xlu0 0
        %485 = vperm.xlu0 %484, %v479
        %v486 = vpop.permute.xlu0 %485
        %v488 = vsub.f32 %v472, %v486
        %v489 = vmul.f32 %v488, 1.442695
        %v490 = vpow.pop %v489
        %v491 = vld [vmem:[#allocation4] sm:$0xff]
        %v492 = vmul.f32 %v482, %v491
        %v493 = vsel %vm475, %v490, 0.0
        %494 = vadd.xlane.f32.xlu0 %v493
        %v495 = vpop.xlane.xlu0 %494
        %v496 = vadd.f32 %v492, %v495
        %vm497 = vcmask 7168
        %498 = vst.msk [vmem:[#allocation4] sm:$0xff] %vm497, %v496
        %v499 = vld [vmem:[#allocation5] sm:$0xff]
        %501 = vset.pattern.permute.xlu0 0
        %502 = vperm.xlu0 %501, %v482
        %v503 = vpop.permute.xlu0 %502
        %v505 = vmul.f32 %v503, %v499
        %v506 = vld [vmem:[%s284] sm:$0x1]
        %v507 = vld [vmem:[%s284 + $0x4] sm:$0x1]
        %v508 = vld [vmem:[%s284 + $0x8] sm:$0x1]
        %v509 = vld [vmem:[%s284 + $0xc] sm:$0x1]
        %v510 = vld [vmem:[%s284 + $0x10] sm:$0x1]
        %v511 = vld [vmem:[%s284 + $0x14] sm:$0x1]
        %v512 = vld [vmem:[%s284 + $0x18] sm:$0x1]
        %v513 = vld [vmem:[%s284 + $0x1c] sm:$0x1]
        %v522 = vrot.slane %v507, 7
        %v523 = vsel %vm407, %v522, %v506
        %v524 = vrot.slane %v508, 6
        %v525 = vsel %vm410, %v524, %v523
        %v526 = vrot.slane %v509, 5
        %v527 = vsel %vm413, %v526, %v525
        %v528 = vrot.slane %v510, 4
        %v529 = vsel %vm416, %v528, %v527
        %v530 = vrot.slane %v511, 3
        %v531 = vsel %vm419, %v530, %v529
        %v532 = vrot.slane %v512, 2
        %v533 = vsel %vm422, %v532, %v531
        %v534 = vrot.slane %v513, 1
        %v535 = vsel %vm425, %v534, %v533
        %v538 = vsel %vm475, %v490, 0
        %540 = vmatpush.msra.mxu0 0.0
        %541 = vmatpush.msra.mxu0 0.0
        %542 = vmatpush.msra.mxu0 0.0
        %543 = vmatpush.msra.mxu0 0.0
        %544 = vmatpush.msra.mxu0 0.0
        %545 = vmatpush.msra.mxu0 0.0
        %546 = vmatpush.msra.mxu0 0.0
        %547 = vmatpush.msra.mxu0 0.0
        %548 = vmatpush.msra.mxu0 0.0
        %549 = vmatpush.msra.mxu0 0.0
        %550 = vmatpush.msra.mxu0 0.0
        %551 = vmatpush.msra.mxu0 0.0
        %552 = vmatpush.msra.mxu0 0.0
        %553 = vmatpush.msra.mxu0 0.0
        %554 = vmatpush.msra.mxu0 0.0
        %555 = vmatpush.msra.mxu0 %v535
        %556 = vmatmul.f32.gmra.mxu0 %v538
        %v557 = vpop.f32.mrf.mxu0
        %v558 = vadd.f32 0.0, %v557
        %559 = vdwg.mxu0
        %v560 = vadd.f32 %v505, %v558
        %561 = vst.msk [vmem:[#allocation5] sm:$0xff] %vm449, %v560
        %562 = vst.msk [vmem:[#allocation3] sm:$0xff] %vm497, %v479
        %v563 = vld [vmem:[#allocation2 + $0x1] sm:$0x1]
        %v564 = vld [vmem:[#allocation2 + $0x5] sm:$0x1]
        %v565 = vld [vmem:[#allocation2 + $0x9] sm:$0x1]
        %v566 = vld [vmem:[#allocation2 + $0xd] sm:$0x1]
        %v567 = vld [vmem:[#allocation2 + $0x11] sm:$0x1]
        %v568 = vld [vmem:[#allocation2 + $0x15] sm:$0x1]
        %v569 = vld [vmem:[#allocation2 + $0x19] sm:$0x1]
        %v570 = vld [vmem:[#allocation2 + $0x1d] sm:$0x1]
        %v571 = vld [vmem:[%s274 + $0x1] sm:$0x1]
        %v572 = vld [vmem:[%s274 + $0x5] sm:$0x1]
        %v573 = vld [vmem:[%s274 + $0x9] sm:$0x1]
        %v574 = vld [vmem:[%s274 + $0xd] sm:$0x1]
        %v575 = vld [vmem:[%s274 + $0x11] sm:$0x1]
        %v576 = vld [vmem:[%s274 + $0x15] sm:$0x1]
        %v577 = vld [vmem:[%s274 + $0x19] sm:$0x1]
        %v578 = vld [vmem:[%s274 + $0x1d] sm:$0x1]
        %v587 = vrot.slane %v564, 7
        %v588 = vsel %vm407, %v587, %v563
        %v589 = vrot.slane %v565, 6
        %v590 = vsel %vm410, %v589, %v588
        %v591 = vrot.slane %v566, 5
        %v592 = vsel %vm413, %v591, %v590
        %v593 = vrot.slane %v567, 4
        %v594 = vsel %vm416, %v593, %v592
        %v595 = vrot.slane %v568, 3
        %v596 = vsel %vm419, %v595, %v594
        %v597 = vrot.slane %v569, 2
        %v598 = vsel %vm422, %v597, %v596
        %v599 = vrot.slane %v570, 1
        %v600 = vsel %vm425, %v599, %v598
        %v609 = vrot.slane %v572, 7
        %v610 = vsel %vm407, %v609, %v571
        %v611 = vrot.slane %v573, 6
        %v612 = vsel %vm410, %v611, %v610
        %v613 = vrot.slane %v574, 5
        %v614 = vsel %vm413, %v613, %v612
        %v615 = vrot.slane %v575, 4
        %v616 = vsel %vm416, %v615, %v614
        %v617 = vrot.slane %v576, 3
        %v618 = vsel %vm419, %v617, %v616
        %v619 = vrot.slane %v577, 2
        %v620 = vsel %vm422, %v619, %v618
        %v621 = vrot.slane %v578, 1
        %v622 = vsel %vm425, %v621, %v620
        %v623 = vsel %vm449, %v600, 0
        %v625 = vsel %vm449, %v622, 0
        %627 = vmatpush.xpose.msra.mxu0 0.0
        %628 = vmatpush.xpose.msra.mxu0 0.0
        %629 = vmatpush.xpose.msra.mxu0 0.0
        %630 = vmatpush.xpose.msra.mxu0 0.0
        %631 = vmatpush.xpose.msra.mxu0 0.0
        %632 = vmatpush.xpose.msra.mxu0 0.0
        %633 = vmatpush.xpose.msra.mxu0 0.0
        %634 = vmatpush.xpose.msra.mxu0 0.0
        %635 = vmatpush.xpose.msra.mxu0 0.0
        %636 = vmatpush.xpose.msra.mxu0 0.0
        %637 = vmatpush.xpose.msra.mxu0 0.0
        %638 = vmatpush.xpose.msra.mxu0 0.0
        %639 = vmatpush.xpose.msra.mxu0 0.0
        %640 = vmatpush.xpose.msra.mxu0 0.0
        %641 = vmatpush.xpose.msra.mxu0 0.0
        %642 = vmatpush.xpose.msra.mxu0 %v625
        %643 = vmatmul.f32.gmra.mxu0 %v623
        %v644 = vpop.f32.mrf.mxu0
        %v645 = vadd.f32 %v381, %v644
        %646 = vdwg.mxu0
        %s647 = scalar_lea.vmem [#allocation3], 8
        %v648 = vld [vmem:[%s647] sm:$0xff]
        %v649 = vsel %vm475, %v645, -inf
        %650 = vmax.xlane.f32.xlu0 %v649
        %v651 = vpop.xlane.xlu0 %650
        %v652 = vmax.f32 %v648, %v651
        %v653 = vsub.f32 %v648, %v652
        %v654 = vmul.f32 %v653, 1.442695
        %v655 = vpow.pop %v654
        %657 = vset.pattern.permute.xlu0 0
        %658 = vperm.xlu0 %657, %v652
        %v659 = vpop.permute.xlu0 %658
        %v661 = vsub.f32 %v645, %v659
        %v662 = vmul.f32 %v661, 1.442695
        %v663 = vpow.pop %v662
        %s664 = scalar_lea.vmem [#allocation4], 8
        %v665 = vld [vmem:[%s664] sm:$0xff]
        %v666 = vmul.f32 %v655, %v665
        %v667 = vsel %vm475, %v663, 0.0
        %668 = vadd.xlane.f32.xlu0 %v667
        %v669 = vpop.xlane.xlu0 %668
        %v670 = vadd.f32 %v666, %v669
        %671 = vst.msk [vmem:[%s664] sm:$0xff] %vm497, %v670
        %s672 = scalar_lea.vmem [#allocation5], 8
        %v673 = vld [vmem:[%s672] sm:$0xff]
        %675 = vset.pattern.permute.xlu0 0
        %676 = vperm.xlu0 %675, %v655
        %v677 = vpop.permute.xlu0 %676
        %v679 = vmul.f32 %v677, %v673
        %v680 = vld [vmem:[%s284 + $0x1] sm:$0x1]
        %v681 = vld [vmem:[%s284 + $0x5] sm:$0x1]
        %v682 = vld [vmem:[%s284 + $0x9] sm:$0x1]
        %v683 = vld [vmem:[%s284 + $0xd] sm:$0x1]
        %v684 = vld [vmem:[%s284 + $0x11] sm:$0x1]
        %v685 = vld [vmem:[%s284 + $0x15] sm:$0x1]
        %v686 = vld [vmem:[%s284 + $0x19] sm:$0x1]
        %v687 = vld [vmem:[%s284 + $0x1d] sm:$0x1]
        %v696 = vrot.slane %v681, 7
        %v697 = vsel %vm407, %v696, %v680
        %v698 = vrot.slane %v682, 6
        %v699 = vsel %vm410, %v698, %v697
        %v700 = vrot.slane %v683, 5
        %v701 = vsel %vm413, %v700, %v699
        %v702 = vrot.slane %v684, 4
        %v703 = vsel %vm416, %v702, %v701
        %v704 = vrot.slane %v685, 3
        %v705 = vsel %vm419, %v704, %v703
        %v706 = vrot.slane %v686, 2
        %v707 = vsel %vm422, %v706, %v705
        %v708 = vrot.slane %v687, 1
        %v709 = vsel %vm425, %v708, %v707
        %v712 = vsel %vm475, %v663, 0
        %714 = vmatpush.msra.mxu0 0.0
        %715 = vmatpush.msra.mxu0 0.0
        %716 = vmatpush.msra.mxu0 0.0
        %717 = vmatpush.msra.mxu0 0.0
        %718 = vmatpush.msra.mxu0 0.0
        %719 = vmatpush.msra.mxu0 0.0
        %720 = vmatpush.msra.mxu0 0.0
        %721 = vmatpush.msra.mxu0 0.0
        %722 = vmatpush.msra.mxu0 0.0
        %723 = vmatpush.msra.mxu0 0.0
        %724 = vmatpush.msra.mxu0 0.0
        %725 = vmatpush.msra.mxu0 0.0
        %726 = vmatpush.msra.mxu0 0.0
        %727 = vmatpush.msra.mxu0 0.0
        %728 = vmatpush.msra.mxu0 0.0
        %729 = vmatpush.msra.mxu0 %v709
        %730 = vmatmul.f32.gmra.mxu0 %v712
        %v731 = vpop.f32.mrf.mxu0
        %v732 = vadd.f32 0.0, %v731
        %733 = vdwg.mxu0
        %v734 = vadd.f32 %v679, %v732
        %735 = vst.msk [vmem:[%s672] sm:$0xff] %vm449, %v734
        %736 = vst.msk [vmem:[%s647] sm:$0xff] %vm497, %v652
        %v737 = vld [vmem:[#allocation2 + $0x2] sm:$0x1]
        %v738 = vld [vmem:[#allocation2 + $0x6] sm:$0x1]
        %v739 = vld [vmem:[#allocation2 + $0xa] sm:$0x1]
        %v740 = vld [vmem:[#allocation2 + $0xe] sm:$0x1]
        %v741 = vld [vmem:[#allocation2 + $0x12] sm:$0x1]
        %v742 = vld [vmem:[#allocation2 + $0x16] sm:$0x1]
        %v743 = vld [vmem:[#allocation2 + $0x1a] sm:$0x1]
        %v744 = vld [vmem:[#allocation2 + $0x1e] sm:$0x1]
        %v745 = vld [vmem:[%s274 + $0x2] sm:$0x1]
        %v746 = vld [vmem:[%s274 + $0x6] sm:$0x1]
        %v747 = vld [vmem:[%s274 + $0xa] sm:$0x1]
        %v748 = vld [vmem:[%s274 + $0xe] sm:$0x1]
        %v749 = vld [vmem:[%s274 + $0x12] sm:$0x1]
        %v750 = vld [vmem:[%s274 + $0x16] sm:$0x1]
        %v751 = vld [vmem:[%s274 + $0x1a] sm:$0x1]
        %v752 = vld [vmem:[%s274 + $0x1e] sm:$0x1]
        %v761 = vrot.slane %v738, 7
        %v762 = vsel %vm407, %v761, %v737
        %v763 = vrot.slane %v739, 6
        %v764 = vsel %vm410, %v763, %v762
        %v765 = vrot.slane %v740, 5
        %v766 = vsel %vm413, %v765, %v764
        %v767 = vrot.slane %v741, 4
        %v768 = vsel %vm416, %v767, %v766
        %v769 = vrot.slane %v742, 3
        %v770 = vsel %vm419, %v769, %v768
        %v771 = vrot.slane %v743, 2
        %v772 = vsel %vm422, %v771, %v770
        %v773 = vrot.slane %v744, 1
        %v774 = vsel %vm425, %v773, %v772
        %v783 = vrot.slane %v746, 7
        %v784 = vsel %vm407, %v783, %v745
        %v785 = vrot.slane %v747, 6
        %v786 = vsel %vm410, %v785, %v784
        %v787 = vrot.slane %v748, 5
        %v788 = vsel %vm413, %v787, %v786
        %v789 = vrot.slane %v749, 4
        %v790 = vsel %vm416, %v789, %v788
        %v791 = vrot.slane %v750, 3
        %v792 = vsel %vm419, %v791, %v790
        %v793 = vrot.slane %v751, 2
        %v794 = vsel %vm422, %v793, %v792
        %v795 = vrot.slane %v752, 1
        %v796 = vsel %vm425, %v795, %v794
        %v797 = vsel %vm449, %v774, 0
        %v799 = vsel %vm449, %v796, 0
        %801 = vmatpush.xpose.msra.mxu0 0.0
        %802 = vmatpush.xpose.msra.mxu0 0.0
        %803 = vmatpush.xpose.msra.mxu0 0.0
        %804 = vmatpush.xpose.msra.mxu0 0.0
        %805 = vmatpush.xpose.msra.mxu0 0.0
        %806 = vmatpush.xpose.msra.mxu0 0.0
        %807 = vmatpush.xpose.msra.mxu0 0.0
        %808 = vmatpush.xpose.msra.mxu0 0.0
        %809 = vmatpush.xpose.msra.mxu0 0.0
        %810 = vmatpush.xpose.msra.mxu0 0.0
        %811 = vmatpush.xpose.msra.mxu0 0.0
        %812 = vmatpush.xpose.msra.mxu0 0.0
        %813 = vmatpush.xpose.msra.mxu0 0.0
        %814 = vmatpush.xpose.msra.mxu0 0.0
        %815 = vmatpush.xpose.msra.mxu0 0.0
        %816 = vmatpush.xpose.msra.mxu0 %v799
        %817 = vmatmul.f32.gmra.mxu0 %v797
        %v818 = vpop.f32.mrf.mxu0
        %v819 = vadd.f32 %v381, %v818
        %820 = vdwg.mxu0
        %s821 = scalar_lea.vmem [#allocation3], 16
        %v822 = vld [vmem:[%s821] sm:$0xff]
        %v823 = vsel %vm475, %v819, -inf
        %824 = vmax.xlane.f32.xlu0 %v823
        %v825 = vpop.xlane.xlu0 %824
        %v826 = vmax.f32 %v822, %v825
        %v827 = vsub.f32 %v822, %v826
        %v828 = vmul.f32 %v827, 1.442695
        %v829 = vpow.pop %v828
        %831 = vset.pattern.permute.xlu0 0
        %832 = vperm.xlu0 %831, %v826
        %v833 = vpop.permute.xlu0 %832
        %v835 = vsub.f32 %v819, %v833
        %v836 = vmul.f32 %v835, 1.442695
        %v837 = vpow.pop %v836
        %s838 = scalar_lea.vmem [#allocation4], 16
        %v839 = vld [vmem:[%s838] sm:$0xff]
        %v840 = vmul.f32 %v829, %v839
        %v841 = vsel %vm475, %v837, 0.0
        %842 = vadd.xlane.f32.xlu0 %v841
        %v843 = vpop.xlane.xlu0 %842
        %v844 = vadd.f32 %v840, %v843
        %845 = vst.msk [vmem:[%s838] sm:$0xff] %vm497, %v844
        %s846 = scalar_lea.vmem [#allocation5], 16
        %v847 = vld [vmem:[%s846] sm:$0xff]
        %849 = vset.pattern.permute.xlu0 0
        %850 = vperm.xlu0 %849, %v829
        %v851 = vpop.permute.xlu0 %850
        %v853 = vmul.f32 %v851, %v847
        %v854 = vld [vmem:[%s284 + $0x2] sm:$0x1]
        %v855 = vld [vmem:[%s284 + $0x6] sm:$0x1]
        %v856 = vld [vmem:[%s284 + $0xa] sm:$0x1]
        %v857 = vld [vmem:[%s284 + $0xe] sm:$0x1]
        %v858 = vld [vmem:[%s284 + $0x12] sm:$0x1]
        %v859 = vld [vmem:[%s284 + $0x16] sm:$0x1]
        %v860 = vld [vmem:[%s284 + $0x1a] sm:$0x1]
        %v861 = vld [vmem:[%s284 + $0x1e] sm:$0x1]
        %v870 = vrot.slane %v855, 7
        %v871 = vsel %vm407, %v870, %v854
        %v872 = vrot.slane %v856, 6
        %v873 = vsel %vm410, %v872, %v871
        %v874 = vrot.slane %v857, 5
        %v875 = vsel %vm413, %v874, %v873
        %v876 = vrot.slane %v858, 4
        %v877 = vsel %vm416, %v876, %v875
        %v878 = vrot.slane %v859, 3
        %v879 = vsel %vm419, %v878, %v877
        %v880 = vrot.slane %v860, 2
        %v881 = vsel %vm422, %v880, %v879
        %v882 = vrot.slane %v861, 1
        %v883 = vsel %vm425, %v882, %v881
        %v886 = vsel %vm475, %v837, 0
        %888 = vmatpush.msra.mxu0 0.0
        %889 = vmatpush.msra.mxu0 0.0
        %890 = vmatpush.msra.mxu0 0.0
        %891 = vmatpush.msra.mxu0 0.0
        %892 = vmatpush.msra.mxu0 0.0
        %893 = vmatpush.msra.mxu0 0.0
        %894 = vmatpush.msra.mxu0 0.0
        %895 = vmatpush.msra.mxu0 0.0
        %896 = vmatpush.msra.mxu0 0.0
        %897 = vmatpush.msra.mxu0 0.0
        %898 = vmatpush.msra.mxu0 0.0
        %899 = vmatpush.msra.mxu0 0.0
        %900 = vmatpush.msra.mxu0 0.0
        %901 = vmatpush.msra.mxu0 0.0
        %902 = vmatpush.msra.mxu0 0.0
        %903 = vmatpush.msra.mxu0 %v883
        %904 = vmatmul.f32.gmra.mxu0 %v886
        %v905 = vpop.f32.mrf.mxu0
        %v906 = vadd.f32 0.0, %v905
        %907 = vdwg.mxu0
        %v908 = vadd.f32 %v853, %v906
        %909 = vst.msk [vmem:[%s846] sm:$0xff] %vm449, %v908
        %910 = vst.msk [vmem:[%s821] sm:$0xff] %vm497, %v826
        %v911 = vld [vmem:[#allocation2 + $0x3] sm:$0x1]
        %v912 = vld [vmem:[#allocation2 + $0x7] sm:$0x1]
        %v913 = vld [vmem:[#allocation2 + $0xb] sm:$0x1]
        %v914 = vld [vmem:[#allocation2 + $0xf] sm:$0x1]
        %v915 = vld [vmem:[#allocation2 + $0x13] sm:$0x1]
        %v916 = vld [vmem:[#allocation2 + $0x17] sm:$0x1]
        %v917 = vld [vmem:[#allocation2 + $0x1b] sm:$0x1]
        %v918 = vld [vmem:[#allocation2 + $0x1f] sm:$0x1]
        %v919 = vld [vmem:[%s274 + $0x3] sm:$0x1]
        %v920 = vld [vmem:[%s274 + $0x7] sm:$0x1]
        %v921 = vld [vmem:[%s274 + $0xb] sm:$0x1]
        %v922 = vld [vmem:[%s274 + $0xf] sm:$0x1]
        %v923 = vld [vmem:[%s274 + $0x13] sm:$0x1]
        %v924 = vld [vmem:[%s274 + $0x17] sm:$0x1]
        %v925 = vld [vmem:[%s274 + $0x1b] sm:$0x1]
        %v926 = vld [vmem:[%s274 + $0x1f] sm:$0x1]
        %v935 = vrot.slane %v912, 7
        %v936 = vsel %vm407, %v935, %v911
        %v937 = vrot.slane %v913, 6
        %v938 = vsel %vm410, %v937, %v936
        %v939 = vrot.slane %v914, 5
        %v940 = vsel %vm413, %v939, %v938
        %v941 = vrot.slane %v915, 4
        %v942 = vsel %vm416, %v941, %v940
        %v943 = vrot.slane %v916, 3
        %v944 = vsel %vm419, %v943, %v942
        %v945 = vrot.slane %v917, 2
        %v946 = vsel %vm422, %v945, %v944
        %v947 = vrot.slane %v918, 1
        %v948 = vsel %vm425, %v947, %v946
        %v957 = vrot.slane %v920, 7
        %v958 = vsel %vm407, %v957, %v919
        %v959 = vrot.slane %v921, 6
        %v960 = vsel %vm410, %v959, %v958
        %v961 = vrot.slane %v922, 5
        %v962 = vsel %vm413, %v961, %v960
        %v963 = vrot.slane %v923, 4
        %v964 = vsel %vm416, %v963, %v962
        %v965 = vrot.slane %v924, 3
        %v966 = vsel %vm419, %v965, %v964
        %v967 = vrot.slane %v925, 2
        %v968 = vsel %vm422, %v967, %v966
        %v969 = vrot.slane %v926, 1
        %v970 = vsel %vm425, %v969, %v968
        %v971 = vsel %vm449, %v948, 0
        %v973 = vsel %vm449, %v970, 0
        %975 = vmatpush.xpose.msra.mxu0 0.0
        %976 = vmatpush.xpose.msra.mxu0 0.0
        %977 = vmatpush.xpose.msra.mxu0 0.0
        %978 = vmatpush.xpose.msra.mxu0 0.0
        %979 = vmatpush.xpose.msra.mxu0 0.0
        %980 = vmatpush.xpose.msra.mxu0 0.0
        %981 = vmatpush.xpose.msra.mxu0 0.0
        %982 = vmatpush.xpose.msra.mxu0 0.0
        %983 = vmatpush.xpose.msra.mxu0 0.0
        %984 = vmatpush.xpose.msra.mxu0 0.0
        %985 = vmatpush.xpose.msra.mxu0 0.0
        %986 = vmatpush.xpose.msra.mxu0 0.0
        %987 = vmatpush.xpose.msra.mxu0 0.0
        %988 = vmatpush.xpose.msra.mxu0 0.0
        %989 = vmatpush.xpose.msra.mxu0 0.0
        %990 = vmatpush.xpose.msra.mxu0 %v973
        %991 = vmatmul.f32.gmra.mxu0 %v971
        %v992 = vpop.f32.mrf.mxu0
        %v993 = vadd.f32 %v381, %v992
        %994 = vdwg.mxu0
        %s995 = scalar_lea.vmem [#allocation3], 24
        %v996 = vld [vmem:[%s995] sm:$0xff]
        %v997 = vsel %vm475, %v993, -inf
        %998 = vmax.xlane.f32.xlu0 %v997
        %v999 = vpop.xlane.xlu0 %998
        %v1000 = vmax.f32 %v996, %v999
        %v1001 = vsub.f32 %v996, %v1000
        %v1002 = vmul.f32 %v1001, 1.442695
        %v1003 = vpow.pop %v1002
        %1005 = vset.pattern.permute.xlu0 0
        %1006 = vperm.xlu0 %1005, %v1000
        %v1007 = vpop.permute.xlu0 %1006
        %v1009 = vsub.f32 %v993, %v1007
        %v1010 = vmul.f32 %v1009, 1.442695
        %v1011 = vpow.pop %v1010
        %s1012 = scalar_lea.vmem [#allocation4], 24
        %v1013 = vld [vmem:[%s1012] sm:$0xff]
        %v1014 = vmul.f32 %v1003, %v1013
        %v1015 = vsel %vm475, %v1011, 0.0
        %1016 = vadd.xlane.f32.xlu0 %v1015
        %v1017 = vpop.xlane.xlu0 %1016
        %v1018 = vadd.f32 %v1014, %v1017
        %1019 = vst.msk [vmem:[%s1012] sm:$0xff] %vm497, %v1018
        %s1020 = scalar_lea.vmem [#allocation5], 24
        %v1021 = vld [vmem:[%s1020] sm:$0xff]
        %1023 = vset.pattern.permute.xlu0 0
        %1024 = vperm.xlu0 %1023, %v1003
        %v1025 = vpop.permute.xlu0 %1024
        %v1027 = vmul.f32 %v1025, %v1021
        %v1028 = vld [vmem:[%s284 + $0x3] sm:$0x1]
        %v1029 = vld [vmem:[%s284 + $0x7] sm:$0x1]
        %v1030 = vld [vmem:[%s284 + $0xb] sm:$0x1]
        %v1031 = vld [vmem:[%s284 + $0xf] sm:$0x1]
        %v1032 = vld [vmem:[%s284 + $0x13] sm:$0x1]
        %v1033 = vld [vmem:[%s284 + $0x17] sm:$0x1]
        %v1034 = vld [vmem:[%s284 + $0x1b] sm:$0x1]
        %v1035 = vld [vmem:[%s284 + $0x1f] sm:$0x1]
        %v1044 = vrot.slane %v1029, 7
        %v1045 = vsel %vm407, %v1044, %v1028
        %v1046 = vrot.slane %v1030, 6
        %v1047 = vsel %vm410, %v1046, %v1045
        %v1048 = vrot.slane %v1031, 5
        %v1049 = vsel %vm413, %v1048, %v1047
        %v1050 = vrot.slane %v1032, 4
        %v1051 = vsel %vm416, %v1050, %v1049
        %v1052 = vrot.slane %v1033, 3
        %v1053 = vsel %vm419, %v1052, %v1051
        %v1054 = vrot.slane %v1034, 2
        %v1055 = vsel %vm422, %v1054, %v1053
        %v1056 = vrot.slane %v1035, 1
        %v1057 = vsel %vm425, %v1056, %v1055
        %v1060 = vsel %vm475, %v1011, 0
        %1062 = vmatpush.msra.mxu0 0.0
        %1063 = vmatpush.msra.mxu0 0.0
        %1064 = vmatpush.msra.mxu0 0.0
        %1065 = vmatpush.msra.mxu0 0.0
        %1066 = vmatpush.msra.mxu0 0.0
        %1067 = vmatpush.msra.mxu0 0.0
        %1068 = vmatpush.msra.mxu0 0.0
        %1069 = vmatpush.msra.mxu0 0.0
        %1070 = vmatpush.msra.mxu0 0.0
        %1071 = vmatpush.msra.mxu0 0.0
        %1072 = vmatpush.msra.mxu0 0.0
        %1073 = vmatpush.msra.mxu0 0.0
        %1074 = vmatpush.msra.mxu0 0.0
        %1075 = vmatpush.msra.mxu0 0.0
        %1076 = vmatpush.msra.mxu0 0.0
        %1077 = vmatpush.msra.mxu0 %v1057
        %1078 = vmatmul.f32.gmra.mxu0 %v1060
        %v1079 = vpop.f32.mrf.mxu0
        %v1080 = vadd.f32 0.0, %v1079
        %1081 = vdwg.mxu0
        %v1082 = vadd.f32 %v1027, %v1080
        %1083 = vst.msk [vmem:[%s1020] sm:$0xff] %vm449, %v1082
        %1084 = vst.msk [vmem:[%s995] sm:$0xff] %vm497, %v1000
        %p1085 = scmp.eq.s32.totalorder %s326, %s325
        // Predicated region
        $region49: #{tpu_custom_call.1} parent=31 // pred_check
          %p1086 = pneg %p1085
        $region50: #{tpu_custom_call.1} parent=31 // pred_check_branch
          %1088 = sbr.rel (%p1086) target = $region52
        $region51: #{tpu_custom_call.1} parent=31 // pred_region
          %v1089 = vld [vmem:[#allocation4] sm:$0xff]
          %v1090 = vrcp.pop %v1089
          %v1091 = vmul.f32 %v1089, %v1090
          %v1092 = vsub.f32 1.0, %v1091
          %v1093 = vmul.f32 %v1090, %v1092
          %v1094 = vadd.f32 %v1090, %v1093
          %vm1095 = vweird.f32 %v1089
          %vm1096 = vweird.f32 %v1090
          %vm1097 = vmor %vm1095, %vm1096
          %v1098 = vsel %vm1097, %v1090, %v1094
          %v1099 = vand.u32 2147483647, %v1089
          %vm1100 = vcmp.eq.f32.partialorder %v1099, 8.507059e+37
          %v1101 = vand.u32 %v1089, 2147483648
          %v1102 = vor.u32 1.1754944e-38, %v1101
          %v1103 = vsel %vm1100, %v1102, %v1098
          %v1104 = vld [vmem:[#allocation5] sm:$0xff]
          %1106 = vset.pattern.permute.xlu0 0
          %1107 = vperm.xlu0 %1106, %v1103
          %v1108 = vpop.permute.xlu0 %1107
          %v1110 = vmul.f32 %v1104, %v1108
          %1111 = vst.msk [vmem:[%s317] sm:$0xff] %vm449, %v1110
          %v1112 = vld [vmem:[%s664] sm:$0xff]
          %v1113 = vrcp.pop %v1112
          %v1114 = vmul.f32 %v1112, %v1113
          %v1115 = vsub.f32 1.0, %v1114
          %v1116 = vmul.f32 %v1113, %v1115
          %v1117 = vadd.f32 %v1113, %v1116
          %vm1118 = vweird.f32 %v1112
          %vm1119 = vweird.f32 %v1113
          %vm1120 = vmor %vm1118, %vm1119
          %v1121 = vsel %vm1120, %v1113, %v1117
          %v1122 = vand.u32 2147483647, %v1112
          %vm1123 = vcmp.eq.f32.partialorder %v1122, 8.507059e+37
          %v1124 = vand.u32 %v1112, 2147483648
          %v1125 = vor.u32 1.1754944e-38, %v1124
          %v1126 = vsel %vm1123, %v1125, %v1121
          %v1127 = vld [vmem:[%s672] sm:$0xff]
          %1129 = vset.pattern.permute.xlu0 0
          %1130 = vperm.xlu0 %1129, %v1126
          %v1131 = vpop.permute.xlu0 %1130
          %v1133 = vmul.f32 %v1127, %v1131
          %1135 = vrot.lane.b32.xlu0 %v1133, 32
          %v1136 = vpop.permute.xlu0 %1135
          %vm1138 = vcmask 523520
          %1139 = vst.msk [vmem:[%s317] sm:$0xff] %vm1138, %v1136
          %v1140 = vld [vmem:[%s838] sm:$0xff]
          %v1141 = vrcp.pop %v1140
          %v1142 = vmul.f32 %v1140, %v1141
          %v1143 = vsub.f32 1.0, %v1142
          %v1144 = vmul.f32 %v1141, %v1143
          %v1145 = vadd.f32 %v1141, %v1144
          %vm1146 = vweird.f32 %v1140
          %vm1147 = vweird.f32 %v1141
          %vm1148 = vmor %vm1146, %vm1147
          %v1149 = vsel %vm1148, %v1141, %v1145
          %v1150 = vand.u32 2147483647, %v1140
          %vm1151 = vcmp.eq.f32.partialorder %v1150, 8.507059e+37
          %v1152 = vand.u32 %v1140, 2147483648
          %v1153 = vor.u32 1.1754944e-38, %v1152
          %v1154 = vsel %vm1151, %v1153, %v1149
          %v1155 = vld [vmem:[%s846] sm:$0xff]
          %1157 = vset.pattern.permute.xlu0 0
          %1158 = vperm.xlu0 %1157, %v1154
          %v1159 = vpop.permute.xlu0 %1158
          %v1161 = vmul.f32 %v1155, %v1159
          %1163 = vrot.lane.b32.xlu0 %v1161, 64
          %v1164 = vpop.permute.xlu0 %1163
          %vm1166 = vcmask 785920
          %1167 = vst.msk [vmem:[%s317] sm:$0xff] %vm1166, %v1164
          %v1168 = vld [vmem:[%s1012] sm:$0xff]
          %v1169 = vrcp.pop %v1168
          %v1170 = vmul.f32 %v1168, %v1169
          %v1171 = vsub.f32 1.0, %v1170
          %v1172 = vmul.f32 %v1169, %v1171
          %v1173 = vadd.f32 %v1169, %v1172
          %vm1174 = vweird.f32 %v1168
          %vm1175 = vweird.f32 %v1169
          %vm1176 = vmor %vm1174, %vm1175
          %v1177 = vsel %vm1176, %v1169, %v1173
          %v1178 = vand.u32 2147483647, %v1168
          %vm1179 = vcmp.eq.f32.partialorder %v1178, 8.507059e+37
          %v1180 = vand.u32 %v1168, 2147483648
          %v1181 = vor.u32 1.1754944e-38, %v1180
          %v1182 = vsel %vm1179, %v1181, %v1177
          %v1183 = vld [vmem:[%s1020] sm:$0xff]
          %1185 = vset.pattern.permute.xlu0 0
          %1186 = vperm.xlu0 %1185, %v1182
          %v1187 = vpop.permute.xlu0 %1186
          %v1189 = vmul.f32 %v1183, %v1187
          %1191 = vrot.lane.b32.xlu0 %v1189, 96
          %v1192 = vpop.permute.xlu0 %1191
          %vm1194 = vcmask 1048320
          %1195 = vst.msk [vmem:[%s317] sm:$0xff] %vm1194, %v1192
        $region52: #{tpu_custom_call.1} parent=31 // pred_fallthru
          _
        %s1196 = sand.u32 %s141, 1
        %s1197 = scalar_lea.sflag [#allocation11], %s1196
        %s1198 = sand.u32 %s141, 1
        %s1199 = smul.addr %s1198, 8
        %s1200 = scalar_lea.vmem [#allocation15], %s1199
        // Predicated region
        $region53: #{tpu_custom_call.1} parent=31 // pred_check
          %p1201 = pneg %p151
        $region54: #{tpu_custom_call.1} parent=31 // pred_check_branch
          %1203 = sbr.rel (%p1201) target = $region56
        $region55: #{tpu_custom_call.1} parent=31 // pred_region
          %s1204 = sld [smem:[#allocation7 + %s32]]
          %1206 = vsyncadd %s1197, 0
          %s1207 = sadd.s32 %s1204, %s31
          %s1208 = smul.addr %s1207, 8
          %s1209 = scalar_lea.hbm %s5, %s1208
          %s1211 = sshll.u32 %s1200, 4
          %s1212 = int_to_ptr.vmem [resolvable:$true] %s1211
          %s1213 = sshll.u32 %s1209, 4
          %s1214 = int_to_ptr.hbm [resolvable:$true] %s1213
          %1216 = dma.vmem_to_hbm [thread:$0]  %s1212, 128, %s1214, %s1197
        $region56: #{tpu_custom_call.1} parent=31 // pred_fallthru
          _
      $region32: #{tpu_custom_call.1} parent=5 // pred_fallthru
        _
      %p1217 = scmp.le.s32.totalorder 2, %s22
      // Predicated region
      $region57: #{tpu_custom_call.1} parent=5 // pred_check
        %p1218 = pneg %p1217
      $region58: #{tpu_custom_call.1} parent=5 // pred_check_branch
        %1220 = sbr.rel (%p1218) target = $region60
      $region59: #{tpu_custom_call.1} parent=5 // pred_region
        %s1221 = ssub.s32 %s22, 2
        // Predicated region
        $region61: #{tpu_custom_call.1} parent=59 // pred_check
          %p1222 = pneg %p157
        $region62: #{tpu_custom_call.1} parent=59 // pred_check_branch
          %1224 = sbr.rel (%p1222) target = $region64
        $region63: #{tpu_custom_call.1} parent=59 // pred_region
          %s1225 = sand.u32 %s142, 1
          %s1226 = scalar_lea.sflag [#allocation11], %s1225
          %s1227 = sand.u32 %s142, 1
          %s1228 = smul.addr %s1227, 8
          %s1229 = scalar_lea.vmem [#allocation15], %s1228
          %1231 = dma.done %s1226, 128
        $region64: #{tpu_custom_call.1} parent=59 // pred_fallthru
          _
      $region60: #{tpu_custom_call.1} parent=5 // pred_fallthru
        _
    $region6: #{tpu_custom_call.1} parent=1 // loop_footer
      %s26 = sadd.s32 1, %s22
    $region7: #{tpu_custom_call.1} parent=1 // loop_footer_branch
      %21 = sbr.rel target = $region3
    $region8: #{tpu_custom_call.1} parent=1 // loop_exit
      _
    %1232 = vsyncpa [#allocation10], 1
    %s1233 = scalar_lea.sflag [#allocation10], 1
    %1234 = vsyncpa %s1233, 1
    %1235 = vsyncpa [#allocation13], 1
    %s1236 = scalar_lea.sflag [#allocation13], 1
    %1237 = vsyncpa %s1236, 1
    %1238 = vsyncpa [#allocation11], 1
    %s1239 = scalar_lea.sflag [#allocation11], 1
    %1240 = vsyncpa %s1239, 1

</llo_original>
